<compile_context>
chip_gen: v5e
topology: v5e:2x2
jax: 0.10.0
libtpu: 0.0.40
codegen_flags: <defaults>
</compile_context>

<pallas_src>
import functools
import math

import numpy as np
import jax
import jax.numpy as jnp
from jax.experimental import pallas as pl
from jax.experimental.pallas import tpu as pltpu


# ----------------------------------------------------------------------------
# Fused transformer-stack + readout kernel
# ----------------------------------------------------------------------------

def _fused_layers_kernel(x_ref, bias_ref, mask_ref,
                         wqkv_ref, bqkv_ref, wo_ref, bo_ref,
                         ln1g_ref, ln1b_ref, w1_ref, b1_ref,
                         w2_ref, b2_ref, ln2g_ref, ln2b_ref,
                         scores_ref, hgraph_ref,
                         x_res_ref, bias_res_ref,
                         *, n_head, d_head, n_layers, weights_resident):
    l = pl.program_id(1)  # layer index (innermost, "arbitrary")

    # Stage x and the fp32 attention bias into VMEM scratch once per graph block.
    @pl.when(l == 0)
    def _():
        x_res_ref[...] = x_ref[...]
        bias_res_ref[...] = bias_ref[...].astype(jnp.float32)

    Bb, N, D = x_res_ref.shape
    H, dh = n_head, d_head
    # Weight layer index: dynamic when the full stack is resident, else block index 0.
    li = l if weights_resident else 0

    x = x_res_ref[...]                                   # (Bb, N, D) fp32
    mask = mask_ref[...]                                 # (Bb, N, 1) fp32
    mask2d = mask.reshape(Bb * N, 1)
    bias = bias_res_ref[...]                             # (Bb, N, N) fp32 (precomputed)

    x2d = x.reshape(Bb * N, D)

    # Fused QKV projection over all graphs in the block (bf16 MXU inputs, fp32 acc).
    qkv = jnp.dot(x2d.astype(jnp.bfloat16), wqkv_ref[li],
                  preferred_element_type=jnp.float32) + bqkv_ref[li]     # (Bb*N, 3D)
    scale = 1.0 / math.sqrt(dh)
    q = qkv[:, :D] * scale                               # fold scale into q (fewer VPU elems)
    k = qkv[:, D:2 * D]
    v = qkv[:, 2 * D:]

    def to_heads(t):                                     # (Bb*N, D) -> (Bb*H, N, dh) bf16
        t4 = t.reshape(Bb, N, H, dh)
        return jnp.transpose(t4, (0, 2, 1, 3)).reshape(Bb * H, N, dh).astype(jnp.bfloat16)

    qh, kh, vh = to_heads(q), to_heads(k), to_heads(v)

    # Head-batched attention: one einsum pair for all heads/graphs in the block.
    logits = jnp.einsum('gqd,gkd->gqk', qh, kh,
                        preferred_element_type=jnp.float32).reshape(Bb, H, N, N)
    logits = logits + bias[:, None, :, :]
    m = jnp.max(logits, axis=-1, keepdims=True)
    e = jnp.exp(logits - m)
    denom = jnp.sum(e, axis=-1, keepdims=True)
    p = e * pl.reciprocal(denom, approx=True)            # (Bb, H, N, N), EUP divide

    # Emit scores directly in the module's (L, B, H, N, N) layout, bf16.
    scores_ref[0] = p.astype(scores_ref.dtype)

    ctx = jnp.einsum('gqk,gkd->gqd',
                     p.reshape(Bb * H, N, N).astype(jnp.bfloat16), vh,
                     preferred_element_type=jnp.float32)                 # (Bb*H, N, dh)
    ctx = jnp.transpose(ctx.reshape(Bb, H, N, dh), (0, 2, 1, 3)).reshape(Bb * N, D)

    attn = jnp.dot(ctx.astype(jnp.bfloat16), wo_ref[li],
                   preferred_element_type=jnp.float32) + bo_ref[li]
    attn = attn * mask2d                                 # padding_mask gating

    # residual + layernorm 1 (fp32)
    y = x2d + attn
    mu = jnp.mean(y, axis=-1, keepdims=True)
    var = jnp.mean(jnp.square(y - mu), axis=-1, keepdims=True)
    y = (y - mu) * jax.lax.rsqrt(var + 1e-5) * ln1g_ref[li] + ln1b_ref[li]

    # feed-forward (bf16 MXU, fp32 accumulate)
    ff = jnp.maximum(jnp.dot(y.astype(jnp.bfloat16), w1_ref[li],
                             preferred_element_type=jnp.float32) + b1_ref[li], 0.0)
    ff = jnp.dot(ff.astype(jnp.bfloat16), w2_ref[li],
                 preferred_element_type=jnp.float32) + b2_ref[li]

    # residual + layernorm 2 (fp32)
    z = y + ff
    mu2 = jnp.mean(z, axis=-1, keepdims=True)
    var2 = jnp.mean(jnp.square(z - mu2), axis=-1, keepdims=True)
    z = (z - mu2) * jax.lax.rsqrt(var2 + 1e-5) * ln2g_ref[li] + ln2b_ref[li]

    z3d = z.reshape(Bb, N, D)
    x_res_ref[...] = z3d                                 # carry to next layer (stays in VMEM)

    # Fused masked-mean readout on the last layer (MeanAggregation over real nodes).
    @pl.when(l == n_layers - 1)
    def _():
        summed = jnp.sum(z3d * mask, axis=1, keepdims=True)              # (Bb, 1, D)
        cnt = jnp.maximum(jnp.sum(mask, axis=1, keepdims=True), 1.0)     # (Bb, 1, 1)
        hgraph_ref[...] = summed / cnt


def fused_transformer(x, attn_bias, mask, stacked, *, n_head, graphs_per_block=None):
    """Runs all transformer layers + readout in one pallas_call.

    x: (B, N, D) fp32, attn_bias: (B, N, N) bf16 ((1-adj)*-100), mask: (B, N, 1) fp32.
    stacked: dict of per-layer weights stacked on a leading L axis.
    Returns (h_graph (B, D) fp32, scores_all (L, B, H, N, N) bf16).
    """
    B, N, D = x.shape
    L = stacked["wqkv"].shape[0]
    F = stacked["w1"].shape[2]
    H = n_head

    if graphs_per_block is None:
        # nb >= 2 so the "parallel" graph axis shards across v7x's two TensorCores.
        Bb = B // 2 if (B >= 2 and B % 2 == 0) else B
    else:
        Bb = graphs_per_block
    assert B % Bb == 0, "graph block must tile B"
    nb = B // Bb

    # Generation-aware VMEM budget: explicit scoped limit (v5e default is only 16 MiB,
    # v7x physical is 64 MiB), leave headroom for double-buffered blocks.
    try:
        vmem_cap = int(pltpu.get_tpu_info().vmem_capacity_bytes)
    except Exception:
        vmem_cap = 64 << 20
    vmem_limit = int(min(vmem_cap * 3 // 4, 96 << 20))

    # Keep the whole stacked weight set resident in VMEM when it fits the budget
    # (removes per-(b,l) weight DMA); stream per-layer blocks otherwise (v7x, big models).
    w_bytes = sum(int(np.prod(v.shape)) * v.dtype.itemsize for v in stacked.values())
    weights_resident = w_bytes <= vmem_limit // 4

    kernel = functools.partial(_fused_layers_kernel,
                               n_head=H, d_head=D // H, n_layers=L,
                               weights_resident=weights_resident)

    def wspec(shape):
        nd = len(shape)
        if weights_resident:
            # Full-L block, constant index_map -> DMA'd once, resident for the whole grid.
            return pl.BlockSpec((L,) + shape, lambda b, l, nd=nd: (0,) * (nd + 1))
        # Per-layer block, re-fetched when the layer index changes.
        return pl.BlockSpec((1,) + shape, lambda b, l, nd=nd: (l,) + (0,) * nd)

    in_specs = [
        pl.BlockSpec((Bb, N, D), lambda b, l: (b, 0, 0)),   # x (fetched once per graph block)
        pl.BlockSpec((Bb, N, N), lambda b, l: (b, 0, 0)),   # precomputed bias (bf16)
        pl.BlockSpec((Bb, N, 1), lambda b, l: (b, 0, 0)),   # padding mask
        wspec((D, 3 * D)), wspec((1, 3 * D)),               # Wqkv (bf16), bqkv
        wspec((D, D)), wspec((1, D)),                       # Wo (bf16), bo
        wspec((1, D)), wspec((1, D)),                       # ln1 gamma, beta
        wspec((D, F)), wspec((1, F)),                       # W1 (bf16), b1
        wspec((F, D)), wspec((1, D)),                       # W2 (bf16), b2
        wspec((1, D)), wspec((1, D)),                       # ln2 gamma, beta
    ]
    out_specs = (
        # Scores already in (L, B, H, N, N) module layout -> no post-kernel transpose.
        pl.BlockSpec((1, Bb, H, N, N), lambda b, l: (l, b, 0, 0, 0)),
        # Graph embeddings with a size-1 middle axis so the sublane block dim is full.
        pl.BlockSpec((Bb, 1, D), lambda b, l: (b, 0, 0)),
    )
    out_shape = (
        jax.ShapeDtypeStruct((L, B, H, N, N), jnp.bfloat16),
        jax.ShapeDtypeStruct((B, 1, D), jnp.float32),
    )

    scores_all, h_graph = pl.pallas_call(
        kernel,
        grid=(nb, L),                                    # layer axis innermost (carried in VMEM)
        in_specs=in_specs,
        out_specs=out_specs,
        out_shape=out_shape,
        scratch_shapes=[pltpu.VMEM((Bb, N, D), jnp.float32),   # resident x across layers
                        pltpu.VMEM((Bb, N, N), jnp.float32)],  # fp32 bias (cast once at l==0)
        compiler_params=pltpu.CompilerParams(
            dimension_semantics=("parallel", "arbitrary"),
            vmem_limit_bytes=vmem_limit),
    )(x, attn_bias, mask,
      stacked["wqkv"], stacked["bqkv"], stacked["wo"], stacked["bo"],
      stacked["ln1_g"], stacked["ln1_b"], stacked["w1"], stacked["b1"],
      stacked["w2"], stacked["b2"], stacked["ln2_g"], stacked["ln2_b"])
    return h_graph[:, 0, :], scores_all


# ----------------------------------------------------------------------------
# Full forward (glue in plain JAX: embedding, laplacian PE, dense-batch scatter)
# ----------------------------------------------------------------------------

def graph_representation_forward(params, node_labels, eigvecs, batch_np, pos_np,
                                 edge_index_np, *, n_graphs, max_nodes, n_head):
    B, N = n_graphs, max_nodes
    batch = jnp.asarray(batch_np)
    pos = jnp.asarray(pos_np)

    # embedding + laplacian positional encoding (input dropout -> identity, eval mode)
    h = params["embedding"][node_labels]                           # (total, D)
    h = h + eigvecs @ params["pos_w"] + params["pos_b"]
    D = h.shape[1]

    # to_dense_batch / to_dense_adj (irregular scatter, glue)
    x = jnp.zeros((B, N, D), jnp.float32).at[batch, pos].set(h)
    mask = jnp.zeros((B, N, 1), jnp.float32).at[batch, pos, 0].set(1.0)

    src, dst = edge_index_np[0], edge_index_np[1]
    adj = jnp.zeros((B, N, N), jnp.float32).at[
        batch_np[src], pos_np[src], pos_np[dst]].set(1.0)
    # Hoisted additive attention bias: computed once, bf16 over the wire, NOT head-tiled.
    attn_bias = ((1.0 - adj) * -100.0).astype(jnp.bfloat16)

    # fused transformer stack + masked-mean readout (Pallas)
    h_graph, scores_all = fused_transformer(x, attn_bias, mask, params["layers"],
                                            n_head=n_head)

    # Already in per-layer (B, H, N, N) layout (bf16); no transpose round trip.
    L = scores_all.shape[0]
    attention_scores = [scores_all[i] for i in range(L)]
    return h_graph, attention_scores


# ----------------------------------------------------------------------------
# Deterministic parameter init (per-layer weights stacked on a leading L axis)
# ----------------------------------------------------------------------------

def init_params(key, *, n_nodes_input, n_hidden, n_head, n_feedforward, n_layers, k):
    D, F, L = n_hidden, n_feedforward, n_layers
    keys = iter(jax.random.split(key, 8))

    def w(shape, scale=0.1):
        return jax.random.normal(next(keys), shape, jnp.float32) * scale

    params = {
        "embedding": w((n_nodes_input, D)),
        "pos_w": w((k, D)),
        "pos_b": jnp.zeros((D,), jnp.float32),
        "layers": {
            # matmul weights stored in bf16 (fp32 accumulation inside the kernel);
            # NOTE: diverges slightly (~1e-3) from an fp32 PyTorch reference.
            "wqkv": w((L, D, 3 * D)).astype(jnp.bfloat16),
            "bqkv": jnp.zeros((L, 1, 3 * D), jnp.float32),
            "wo": w((L, D, D)).astype(jnp.bfloat16),
            "bo": jnp.zeros((L, 1, D), jnp.float32),
            "ln1_g": jnp.ones((L, 1, D), jnp.float32),
            "ln1_b": jnp.zeros((L, 1, D), jnp.float32),
            "w1": w((L, D, F)).astype(jnp.bfloat16),
            "b1": jnp.zeros((L, 1, F), jnp.float32),
            "w2": w((L, F, D)).astype(jnp.bfloat16),
            "b2": jnp.zeros((L, 1, D), jnp.float32),
            "ln2_g": jnp.ones((L, 1, D), jnp.float32),
            "ln2_b": jnp.zeros((L, 1, D), jnp.float32),
        },
    }
    return params


# ----------------------------------------------------------------------------
# Main
# ----------------------------------------------------------------------------

if __name__ == "__main__":
    key = jax.random.PRNGKey(0)

    # small config consistent with the module's constructor
    n_nodes_input = 20
    n_hidden = 32
    n_head = 4
    n_feedforward = 64
    n_layers = 2
    k = 4

    # synthetic 2-graph batch (graph sizes 6 and 8 nodes)
    graph_sizes = [6, 8]
    n_graphs = len(graph_sizes)
    max_nodes = max(graph_sizes)
    total_nodes = sum(graph_sizes)

    batch_np = np.repeat(np.arange(n_graphs), graph_sizes).astype(np.int32)
    offsets = np.concatenate([[0], np.cumsum(graph_sizes)[:-1]]).astype(np.int32)
    pos_np = (np.arange(total_nodes) - offsets[batch_np]).astype(np.int32)

    # ring graphs (both edge directions)
    edges = []
    start = 0
    for sz in graph_sizes:
        for i in range(sz):
            j = (i + 1) % sz
            edges.append((start + i, start + j))
            edges.append((start + j, start + i))
        start += sz
    edge_index_np = np.asarray(edges, dtype=np.int32).T   # (2, E)

    k_lab, k_eig, k_par = jax.random.split(key, 3)
    node_labels = jax.random.randint(k_lab, (total_nodes,), 0, n_nodes_input)
    eigvecs = jax.random.normal(k_eig, (total_nodes, k), jnp.float32)

    params = init_params(k_par, n_nodes_input=n_nodes_input, n_hidden=n_hidden,
                         n_head=n_head, n_feedforward=n_feedforward,
                         n_layers=n_layers, k=k)

    h_graph, attention_scores = graph_representation_forward(
        params, node_labels, eigvecs, batch_np, pos_np, edge_index_np,
        n_graphs=n_graphs, max_nodes=max_nodes, n_head=n_head)

    jax.block_until_ready(h_graph)
    for s in attention_scores:
        jax.block_until_ready(s)

    assert h_graph.shape == (n_graphs, n_hidden)
    assert len(attention_scores) == n_layers
    assert attention_scores[0].shape == (n_graphs, n_head, max_nodes, max_nodes)
    print("KERNEL_OK")
</pallas_src>

<mosaic_0001>
module attributes {stable_mosaic.version = 11 : i64} {
  func.func @_fused_layers_kernel(%arg0: i32, %arg1: i32, %arg2: memref<1x8x32xf32, #tpu.memory_space<vmem>>, %arg3: memref<1x8x8xbf16, #tpu.memory_space<vmem>>, %arg4: memref<1x8x1xf32, #tpu.memory_space<vmem>>, %arg5: memref<2x32x96xbf16, #tpu.memory_space<vmem>>, %arg6: memref<2x1x96xf32, #tpu.memory_space<vmem>>, %arg7: memref<2x32x32xbf16, #tpu.memory_space<vmem>>, %arg8: memref<2x1x32xf32, #tpu.memory_space<vmem>>, %arg9: memref<2x1x32xf32, #tpu.memory_space<vmem>>, %arg10: memref<2x1x32xf32, #tpu.memory_space<vmem>>, %arg11: memref<2x32x64xbf16, #tpu.memory_space<vmem>>, %arg12: memref<2x1x64xf32, #tpu.memory_space<vmem>>, %arg13: memref<2x64x32xbf16, #tpu.memory_space<vmem>>, %arg14: memref<2x1x32xf32, #tpu.memory_space<vmem>>, %arg15: memref<2x1x32xf32, #tpu.memory_space<vmem>>, %arg16: memref<2x1x32xf32, #tpu.memory_space<vmem>>, %arg17: memref<1x1x4x8x8xbf16, #tpu.memory_space<vmem>>, %arg18: memref<1x1x32xf32, #tpu.memory_space<vmem>>, %arg19: memref<1x8x32xf32, #tpu.memory_space<vmem>>, %arg20: memref<1x8x8xf32, #tpu.memory_space<vmem>>) attributes {dimension_semantics = [#tpu.dimension_semantics<parallel>, #tpu.dimension_semantics<arbitrary>], iteration_bounds = array<i64: 2, 2>, scalar_prefetch = 0 : i64, scratch_operands = 2 : i64, tpu.core_type = #tpu.core_type<tc>, window_params = [{transform_indices = @transform_0, window_bounds = array<i64: 1, 8, 32>}, {transform_indices = @transform_1, window_bounds = array<i64: 1, 8, 8>}, {transform_indices = @transform_2, window_bounds = array<i64: 1, 8, 1>}, {pipeline_mode = #tpu.pipeline_mode<synchronous>, transform_indices = @transform_3, window_bounds = array<i64: 2, 32, 96>}, {pipeline_mode = #tpu.pipeline_mode<synchronous>, transform_indices = @transform_4, window_bounds = array<i64: 2, 1, 96>}, {pipeline_mode = #tpu.pipeline_mode<synchronous>, transform_indices = @transform_5, window_bounds = array<i64: 2, 32, 32>}, {pipeline_mode = #tpu.pipeline_mode<synchronous>, transform_indices = @transform_6, window_bounds = array<i64: 2, 1, 32>}, {pipeline_mode = #tpu.pipeline_mode<synchronous>, transform_indices = @transform_7, window_bounds = array<i64: 2, 1, 32>}, {pipeline_mode = #tpu.pipeline_mode<synchronous>, transform_indices = @transform_8, window_bounds = array<i64: 2, 1, 32>}, {pipeline_mode = #tpu.pipeline_mode<synchronous>, transform_indices = @transform_9, window_bounds = array<i64: 2, 32, 64>}, {pipeline_mode = #tpu.pipeline_mode<synchronous>, transform_indices = @transform_10, window_bounds = array<i64: 2, 1, 64>}, {pipeline_mode = #tpu.pipeline_mode<synchronous>, transform_indices = @transform_11, window_bounds = array<i64: 2, 64, 32>}, {pipeline_mode = #tpu.pipeline_mode<synchronous>, transform_indices = @transform_12, window_bounds = array<i64: 2, 1, 32>}, {pipeline_mode = #tpu.pipeline_mode<synchronous>, transform_indices = @transform_13, window_bounds = array<i64: 2, 1, 32>}, {pipeline_mode = #tpu.pipeline_mode<synchronous>, transform_indices = @transform_14, window_bounds = array<i64: 2, 1, 32>}, {transform_indices = @transform_15, window_bounds = array<i64: 1, 1, 4, 8, 8>}, {transform_indices = @transform_16, window_bounds = array<i64: 1, 1, 32>}]} {
    %c0_i32 = arith.constant 0 : i32
    %0 = arith.cmpi eq, %arg1, %c0_i32 : i32
    %1 = arith.extui %0 : i1 to i32
    %c0_i32_0 = arith.constant 0 : i32
    %2 = arith.cmpi ne, %1, %c0_i32_0 : i32
    scf.if %2 {
      %c0_61 = arith.constant 0 : index
      %c0_62 = arith.constant 0 : index
      %c0_63 = arith.constant 0 : index
      %157 = vector.load %arg2[%c0_61, %c0_62, %c0_63] : memref<1x8x32xf32, #tpu.memory_space<vmem>>, vector<1x8x32xf32>
      %c0_64 = arith.constant 0 : index
      %c0_65 = arith.constant 0 : index
      %c0_66 = arith.constant 0 : index
      %158 = vector.load %arg19[%c0_64, %c0_65, %c0_66] : memref<1x8x32xf32, #tpu.memory_space<vmem>>, vector<1x8x32xf32>
      tpu.vector_store %arg19[%c0_64, %c0_65, %c0_66], %157 {strides = array<i32>} : memref<1x8x32xf32, #tpu.memory_space<vmem>>, vector<1x8x32xf32>,
      %c0_67 = arith.constant 0 : index
      %c0_68 = arith.constant 0 : index
      %c0_69 = arith.constant 0 : index
      %159 = vector.load %arg3[%c0_67, %c0_68, %c0_69] : memref<1x8x8xbf16, #tpu.memory_space<vmem>>, vector<1x8x8xbf16>
      %160 = arith.extf %159 : vector<1x8x8xbf16> to vector<1x8x8xf32>
      %c0_70 = arith.constant 0 : index
      %c0_71 = arith.constant 0 : index
      %c0_72 = arith.constant 0 : index
      %161 = vector.load %arg20[%c0_70, %c0_71, %c0_72] : memref<1x8x8xf32, #tpu.memory_space<vmem>>, vector<1x8x8xf32>
      tpu.vector_store %arg20[%c0_70, %c0_71, %c0_72], %160 {strides = array<i32>} : memref<1x8x8xf32, #tpu.memory_space<vmem>>, vector<1x8x8xf32>,
    } else {
    }
    %c0 = arith.constant 0 : index
    %c0_1 = arith.constant 0 : index
    %c0_2 = arith.constant 0 : index
    %3 = vector.load %arg19[%c0, %c0_1, %c0_2] : memref<1x8x32xf32, #tpu.memory_space<vmem>>, vector<1x8x32xf32>
    %c0_3 = arith.constant 0 : index
    %c0_4 = arith.constant 0 : index
    %c0_5 = arith.constant 0 : index
    %4 = vector.load %arg4[%c0_3, %c0_4, %c0_5] : memref<1x8x1xf32, #tpu.memory_space<vmem>>, vector<1x8x1xf32>
    %5 = vector.shape_cast %4 : vector<1x8x1xf32> to vector<8x1xf32>
    %c0_6 = arith.constant 0 : index
    %c0_7 = arith.constant 0 : index
    %c0_8 = arith.constant 0 : index
    %6 = vector.load %arg20[%c0_6, %c0_7, %c0_8] : memref<1x8x8xf32, #tpu.memory_space<vmem>>, vector<1x8x8xf32>
    %7 = vector.shape_cast %3 : vector<1x8x32xf32> to vector<8x32xf32>
    %8 = arith.truncf %7 : vector<8x32xf32> to vector<8x32xbf16>
    %9 = arith.index_cast %arg1 : i32 to index
    %c0_9 = arith.constant 0 : index
    %c0_10 = arith.constant 0 : index
    %10 = vector.load %arg5[%9, %c0_9, %c0_10] : memref<2x32x96xbf16, #tpu.memory_space<vmem>>, vector<1x32x96xbf16>
    %11 = vector.shape_cast %10 : vector<1x32x96xbf16> to vector<32x96xbf16>
    %cst = arith.constant dense<0.000000e+00> : vector<8x96xf32>
    %12 = tpu.matmul %8, %11, %cst {dimension_numbers = #tpu.dot_dimension_numbers<[1], [0], [0], [1], [0, 0, 1, 1], [], []>} : vector<8x32xbf16>, vector<32x96xbf16>, vector<8x96xf32> -> vector<8x96xf32>
    %13 = arith.index_cast %arg1 : i32 to index
    %c0_11 = arith.constant 0 : index
    %c0_12 = arith.constant 0 : index
    %14 = vector.load %arg6[%13, %c0_11, %c0_12] : memref<2x1x96xf32, #tpu.memory_space<vmem>>, vector<1x1x96xf32>
    %15 = vector.shape_cast %14 : vector<1x1x96xf32> to vector<1x96xf32>
    %16 = vector.broadcast %15 : vector<1x96xf32> to vector<8x96xf32>
    %17 = arith.addf %12, %16 : vector<8x96xf32>
    %18 = vector.extract_strided_slice %17 {offsets = [0, 0], sizes = [8, 32], strides = [1, 1]} : vector<8x96xf32> to vector<8x32xf32>
    %cst_13 = arith.constant 0.353553385 : f32
    %19 = vector.broadcast %cst_13 : f32 to vector<8x32xf32>
    %20 = arith.mulf %18, %19 : vector<8x32xf32>
    %21 = vector.extract_strided_slice %17 {offsets = [0, 32], sizes = [8, 32], strides = [1, 1]} : vector<8x96xf32> to vector<8x32xf32>
    %22 = vector.extract_strided_slice %17 {offsets = [0, 64], sizes = [8, 32], strides = [1, 1]} : vector<8x96xf32> to vector<8x32xf32>
    %23 = vector.shape_cast %20 : vector<8x32xf32> to vector<1x8x4x8xf32>
    %24 = tpu.transpose %23, [0, 2, 1, 3] : vector<1x8x4x8xf32> -> vector<1x4x8x8xf32>
    %25 = vector.shape_cast %24 : vector<1x4x8x8xf32> to vector<4x8x8xf32>
    %26 = arith.truncf %25 : vector<4x8x8xf32> to vector<4x8x8xbf16>
    %27 = vector.shape_cast %21 : vector<8x32xf32> to vector<1x8x4x8xf32>
    %28 = tpu.transpose %27, [0, 2, 1, 3] : vector<1x8x4x8xf32> -> vector<1x4x8x8xf32>
    %29 = vector.shape_cast %28 : vector<1x4x8x8xf32> to vector<4x8x8xf32>
    %30 = arith.truncf %29 : vector<4x8x8xf32> to vector<4x8x8xbf16>
    %31 = vector.shape_cast %22 : vector<8x32xf32> to vector<1x8x4x8xf32>
    %32 = tpu.transpose %31, [0, 2, 1, 3] : vector<1x8x4x8xf32> -> vector<1x4x8x8xf32>
    %33 = vector.shape_cast %32 : vector<1x4x8x8xf32> to vector<4x8x8xf32>
    %34 = arith.truncf %33 : vector<4x8x8xf32> to vector<4x8x8xbf16>
    "tpu.trace_start"() <{level = 10 : i32, message = "gqd,gkd->gqk"}> : () -> ()
    %cst_14 = arith.constant dense<0.000000e+00> : vector<4x8x8xf32>
    %35 = tpu.matmul %26, %30, %cst_14 {dimension_numbers = #tpu.dot_dimension_numbers<[2], [2], [1], [1], [0, 0, 0, 1, 1, 1], [0], [0]>} : vector<4x8x8xbf16>, vector<4x8x8xbf16>, vector<4x8x8xf32> -> vector<4x8x8xf32>
    "tpu.trace_stop"() : () -> ()
    %36 = vector.shape_cast %35 : vector<4x8x8xf32> to vector<1x4x8x8xf32>
    %37 = vector.shape_cast %6 : vector<1x8x8xf32> to vector<1x1x8x8xf32>
    %38 = vector.broadcast %37 : vector<1x1x8x8xf32> to vector<1x4x8x8xf32>
    %39 = arith.addf %36, %38 : vector<1x4x8x8xf32>
    %cst_15 = arith.constant dense<0xFF800000> : vector<1x4x8xf32>
    %40 = vector.multi_reduction <maximumf>, %39, %cst_15 [3] : vector<1x4x8x8xf32> to vector<1x4x8xf32>
    %41 = vector.shape_cast %40 : vector<1x4x8xf32> to vector<1x4x8x1xf32>
    %42 = vector.broadcast %41 : vector<1x4x8x1xf32> to vector<1x4x8x8xf32>
    %43 = arith.subf %39, %42 : vector<1x4x8x8xf32>
    %44 = math.exp %43 : vector<1x4x8x8xf32>
    %cst_16 = arith.constant dense<0.000000e+00> : vector<1x4x8xf32>
    %45 = vector.multi_reduction <add>, %44, %cst_16 [3] : vector<1x4x8x8xf32> to vector<1x4x8xf32>
    %46 = vector.shape_cast %45 : vector<1x4x8xf32> to vector<1x4x8x1xf32>
    %47 = tpu.reciprocal %46 {approx = true} : vector<1x4x8x1xf32> -> vector<1x4x8x1xf32>
    %48 = vector.broadcast %47 : vector<1x4x8x1xf32> to vector<1x4x8x8xf32>
    %49 = arith.mulf %44, %48 : vector<1x4x8x8xf32>
    %50 = arith.truncf %49 : vector<1x4x8x8xf32> to vector<1x4x8x8xbf16>
    %c0_17 = arith.constant 0 : index
    %c0_18 = arith.constant 0 : index
    %c0_19 = arith.constant 0 : index
    %c0_20 = arith.constant 0 : index
    %c0_21 = arith.constant 0 : index
    %51 = vector.load %arg17[%c0_17, %c0_18, %c0_19, %c0_20, %c0_21] : memref<1x1x4x8x8xbf16, #tpu.memory_space<vmem>>, vector<1x1x4x8x8xbf16>
    %52 = vector.shape_cast %51 : vector<1x1x4x8x8xbf16> to vector<1x4x8x8xbf16>
    %53 = vector.shape_cast %50 : vector<1x4x8x8xbf16> to vector<1x1x4x8x8xbf16>
    tpu.vector_store %arg17[%c0_17, %c0_18, %c0_19, %c0_20, %c0_21], %53 {strides = array<i32>} : memref<1x1x4x8x8xbf16, #tpu.memory_space<vmem>>, vector<1x1x4x8x8xbf16>,
    %54 = vector.shape_cast %49 : vector<1x4x8x8xf32> to vector<4x8x8xf32>
    %55 = arith.truncf %54 : vector<4x8x8xf32> to vector<4x8x8xbf16>
    "tpu.trace_start"() <{level = 10 : i32, message = "gqk,gkd->gqd"}> : () -> ()
    %cst_22 = arith.constant dense<0.000000e+00> : vector<4x8x8xf32>
    %56 = tpu.matmul %55, %34, %cst_22 {dimension_numbers = #tpu.dot_dimension_numbers<[2], [1], [1], [2], [0, 0, 0, 1, 1, 2], [0], [0]>} : vector<4x8x8xbf16>, vector<4x8x8xbf16>, vector<4x8x8xf32> -> vector<4x8x8xf32>
    "tpu.trace_stop"() : () -> ()
    %57 = vector.shape_cast %56 : vector<4x8x8xf32> to vector<1x4x8x8xf32>
    %58 = tpu.transpose %57, [0, 2, 1, 3] : vector<1x4x8x8xf32> -> vector<1x8x4x8xf32>
    %59 = vector.shape_cast %58 : vector<1x8x4x8xf32> to vector<8x32xf32>
    %60 = arith.truncf %59 : vector<8x32xf32> to vector<8x32xbf16>
    %61 = arith.index_cast %arg1 : i32 to index
    %c0_23 = arith.constant 0 : index
    %c0_24 = arith.constant 0 : index
    %62 = vector.load %arg7[%61, %c0_23, %c0_24] : memref<2x32x32xbf16, #tpu.memory_space<vmem>>, vector<1x32x32xbf16>
    %63 = vector.shape_cast %62 : vector<1x32x32xbf16> to vector<32x32xbf16>
    %cst_25 = arith.constant dense<0.000000e+00> : vector<8x32xf32>
    %64 = tpu.matmul %60, %63, %cst_25 {dimension_numbers = #tpu.dot_dimension_numbers<[1], [0], [0], [1], [0, 0, 1, 1], [], []>} : vector<8x32xbf16>, vector<32x32xbf16>, vector<8x32xf32> -> vector<8x32xf32>
    %65 = arith.index_cast %arg1 : i32 to index
    %c0_26 = arith.constant 0 : index
    %c0_27 = arith.constant 0 : index
    %66 = vector.load %arg8[%65, %c0_26, %c0_27] : memref<2x1x32xf32, #tpu.memory_space<vmem>>, vector<1x1x32xf32>
    %67 = vector.shape_cast %66 : vector<1x1x32xf32> to vector<1x32xf32>
    %68 = vector.broadcast %67 : vector<1x32xf32> to vector<8x32xf32>
    %69 = arith.addf %64, %68 : vector<8x32xf32>
    %70 = vector.broadcast %5 : vector<8x1xf32> to vector<8x32xf32>
    %71 = arith.mulf %69, %70 : vector<8x32xf32>
    %72 = arith.addf %7, %71 : vector<8x32xf32>
    %cst_28 = arith.constant dense<0.000000e+00> : vector<8xf32>
    %73 = vector.multi_reduction <add>, %72, %cst_28 [1] : vector<8x32xf32> to vector<8xf32>
    %74 = vector.shape_cast %73 : vector<8xf32> to vector<8x1xf32>
    %cst_29 = arith.constant 3.200000e+01 : f32
    %75 = vector.broadcast %cst_29 : f32 to vector<8x1xf32>
    %76 = arith.divf %74, %75 : vector<8x1xf32>
    %77 = vector.broadcast %76 : vector<8x1xf32> to vector<8x32xf32>
    %78 = arith.subf %72, %77 : vector<8x32xf32>
    %79 = arith.mulf %78, %78 : vector<8x32xf32>
    %cst_30 = arith.constant dense<0.000000e+00> : vector<8xf32>
    %80 = vector.multi_reduction <add>, %79, %cst_30 [1] : vector<8x32xf32> to vector<8xf32>
    %81 = vector.shape_cast %80 : vector<8xf32> to vector<8x1xf32>
    %cst_31 = arith.constant 3.200000e+01 : f32
    %82 = vector.broadcast %cst_31 : f32 to vector<8x1xf32>
    %83 = arith.divf %81, %82 : vector<8x1xf32>
    %84 = vector.broadcast %76 : vector<8x1xf32> to vector<8x32xf32>
    %85 = arith.subf %72, %84 : vector<8x32xf32>
    %cst_32 = arith.constant 9.99999974E-6 : f32
    %86 = vector.broadcast %cst_32 : f32 to vector<8x1xf32>
    %87 = arith.addf %83, %86 : vector<8x1xf32>
    %88 = math.rsqrt %87 : vector<8x1xf32>
    %89 = vector.broadcast %88 : vector<8x1xf32> to vector<8x32xf32>
    %90 = arith.mulf %85, %89 : vector<8x32xf32>
    %91 = arith.index_cast %arg1 : i32 to index
    %c0_33 = arith.constant 0 : index
    %c0_34 = arith.constant 0 : index
    %92 = vector.load %arg9[%91, %c0_33, %c0_34] : memref<2x1x32xf32, #tpu.memory_space<vmem>>, vector<1x1x32xf32>
    %93 = vector.shape_cast %92 : vector<1x1x32xf32> to vector<1x32xf32>
    %94 = vector.broadcast %93 : vector<1x32xf32> to vector<8x32xf32>
    %95 = arith.mulf %90, %94 : vector<8x32xf32>
    %96 = arith.index_cast %arg1 : i32 to index
    %c0_35 = arith.constant 0 : index
    %c0_36 = arith.constant 0 : index
    %97 = vector.load %arg10[%96, %c0_35, %c0_36] : memref<2x1x32xf32, #tpu.memory_space<vmem>>, vector<1x1x32xf32>
    %98 = vector.shape_cast %97 : vector<1x1x32xf32> to vector<1x32xf32>
    %99 = vector.broadcast %98 : vector<1x32xf32> to vector<8x32xf32>
    %100 = arith.addf %95, %99 : vector<8x32xf32>
    %101 = arith.truncf %100 : vector<8x32xf32> to vector<8x32xbf16>
    %102 = arith.index_cast %arg1 : i32 to index
    %c0_37 = arith.constant 0 : index
    %c0_38 = arith.constant 0 : index
    %103 = vector.load %arg11[%102, %c0_37, %c0_38] : memref<2x32x64xbf16, #tpu.memory_space<vmem>>, vector<1x32x64xbf16>
    %104 = vector.shape_cast %103 : vector<1x32x64xbf16> to vector<32x64xbf16>
    %cst_39 = arith.constant dense<0.000000e+00> : vector<8x64xf32>
    %105 = tpu.matmul %101, %104, %cst_39 {dimension_numbers = #tpu.dot_dimension_numbers<[1], [0], [0], [1], [0, 0, 1, 1], [], []>} : vector<8x32xbf16>, vector<32x64xbf16>, vector<8x64xf32> -> vector<8x64xf32>
    %106 = arith.index_cast %arg1 : i32 to index
    %c0_40 = arith.constant 0 : index
    %c0_41 = arith.constant 0 : index
    %107 = vector.load %arg12[%106, %c0_40, %c0_41] : memref<2x1x64xf32, #tpu.memory_space<vmem>>, vector<1x1x64xf32>
    %108 = vector.shape_cast %107 : vector<1x1x64xf32> to vector<1x64xf32>
    %109 = vector.broadcast %108 : vector<1x64xf32> to vector<8x64xf32>
    %110 = arith.addf %105, %109 : vector<8x64xf32>
    %cst_42 = arith.constant 0.000000e+00 : f32
    %111 = vector.broadcast %cst_42 : f32 to vector<8x64xf32>
    %112 = arith.maximumf %110, %111 : vector<8x64xf32>
    %113 = arith.truncf %112 : vector<8x64xf32> to vector<8x64xbf16>
    %114 = arith.index_cast %arg1 : i32 to index
    %c0_43 = arith.constant 0 : index
    %c0_44 = arith.constant 0 : index
    %115 = vector.load %arg13[%114, %c0_43, %c0_44] : memref<2x64x32xbf16, #tpu.memory_space<vmem>>, vector<1x64x32xbf16>
    %116 = vector.shape_cast %115 : vector<1x64x32xbf16> to vector<64x32xbf16>
    %cst_45 = arith.constant dense<0.000000e+00> : vector<8x32xf32>
    %117 = tpu.matmul %113, %116, %cst_45 {dimension_numbers = #tpu.dot_dimension_numbers<[1], [0], [0], [1], [0, 0, 1, 1], [], []>} : vector<8x64xbf16>, vector<64x32xbf16>, vector<8x32xf32> -> vector<8x32xf32>
    %118 = arith.index_cast %arg1 : i32 to index
    %c0_46 = arith.constant 0 : index
    %c0_47 = arith.constant 0 : index
    %119 = vector.load %arg14[%118, %c0_46, %c0_47] : memref<2x1x32xf32, #tpu.memory_space<vmem>>, vector<1x1x32xf32>
    %120 = vector.shape_cast %119 : vector<1x1x32xf32> to vector<1x32xf32>
    %121 = vector.broadcast %120 : vector<1x32xf32> to vector<8x32xf32>
    %122 = arith.addf %117, %121 : vector<8x32xf32>
    %123 = arith.addf %100, %122 : vector<8x32xf32>
    %cst_48 = arith.constant dense<0.000000e+00> : vector<8xf32>
    %124 = vector.multi_reduction <add>, %123, %cst_48 [1] : vector<8x32xf32> to vector<8xf32>
    %125 = vector.shape_cast %124 : vector<8xf32> to vector<8x1xf32>
    %cst_49 = arith.constant 3.200000e+01 : f32
    %126 = vector.broadcast %cst_49 : f32 to vector<8x1xf32>
    %127 = arith.divf %125, %126 : vector<8x1xf32>
    %128 = vector.broadcast %127 : vector<8x1xf32> to vector<8x32xf32>
    %129 = arith.subf %123, %128 : vector<8x32xf32>
    %130 = arith.mulf %129, %129 : vector<8x32xf32>
    %cst_50 = arith.constant dense<0.000000e+00> : vector<8xf32>
    %131 = vector.multi_reduction <add>, %130, %cst_50 [1] : vector<8x32xf32> to vector<8xf32>
    %132 = vector.shape_cast %131 : vector<8xf32> to vector<8x1xf32>
    %cst_51 = arith.constant 3.200000e+01 : f32
    %133 = vector.broadcast %cst_51 : f32 to vector<8x1xf32>
    %134 = arith.divf %132, %133 : vector<8x1xf32>
    %135 = vector.broadcast %127 : vector<8x1xf32> to vector<8x32xf32>
    %136 = arith.subf %123, %135 : vector<8x32xf32>
    %cst_52 = arith.constant 9.99999974E-6 : f32
    %137 = vector.broadcast %cst_52 : f32 to vector<8x1xf32>
    %138 = arith.addf %134, %137 : vector<8x1xf32>
    %139 = math.rsqrt %138 : vector<8x1xf32>
    %140 = vector.broadcast %139 : vector<8x1xf32> to vector<8x32xf32>
    %141 = arith.mulf %136, %140 : vector<8x32xf32>
    %142 = arith.index_cast %arg1 : i32 to index
    %c0_53 = arith.constant 0 : index
    %c0_54 = arith.constant 0 : index
    %143 = vector.load %arg15[%142, %c0_53, %c0_54] : memref<2x1x32xf32, #tpu.memory_space<vmem>>, vector<1x1x32xf32>
    %144 = vector.shape_cast %143 : vector<1x1x32xf32> to vector<1x32xf32>
    %145 = vector.broadcast %144 : vector<1x32xf32> to vector<8x32xf32>
    %146 = arith.mulf %141, %145 : vector<8x32xf32>
    %147 = arith.index_cast %arg1 : i32 to index
    %c0_55 = arith.constant 0 : index
    %c0_56 = arith.constant 0 : index
    %148 = vector.load %arg16[%147, %c0_55, %c0_56] : memref<2x1x32xf32, #tpu.memory_space<vmem>>, vector<1x1x32xf32>
    %149 = vector.shape_cast %148 : vector<1x1x32xf32> to vector<1x32xf32>
    %150 = vector.broadcast %149 : vector<1x32xf32> to vector<8x32xf32>
    %151 = arith.addf %146, %150 : vector<8x32xf32>
    %152 = vector.shape_cast %151 : vector<8x32xf32> to vector<1x8x32xf32>
    %c0_57 = arith.constant 0 : index
    %c0_58 = arith.constant 0 : index
    %c0_59 = arith.constant 0 : index
    %153 = vector.load %arg19[%c0_57, %c0_58, %c0_59] : memref<1x8x32xf32, #tpu.memory_space<vmem>>, vector<1x8x32xf32>
    tpu.vector_store %arg19[%c0_57, %c0_58, %c0_59], %152 {strides = array<i32>} : memref<1x8x32xf32, #tpu.memory_space<vmem>>, vector<1x8x32xf32>,
    %c1_i32 = arith.constant 1 : i32
    %154 = arith.cmpi eq, %arg1, %c1_i32 : i32
    %155 = arith.extui %154 : i1 to i32
    %c0_i32_60 = arith.constant 0 : i32
    %156 = arith.cmpi ne, %155, %c0_i32_60 : i32
    scf.if %156 {
      %157 = vector.broadcast %4 : vector<1x8x1xf32> to vector<1x8x32xf32>
      %158 = arith.mulf %152, %157 : vector<1x8x32xf32>
      %cst_61 = arith.constant dense<0.000000e+00> : vector<1x32xf32>
      %159 = vector.multi_reduction <add>, %158, %cst_61 [1] : vector<1x8x32xf32> to vector<1x32xf32>
      %160 = vector.shape_cast %159 : vector<1x32xf32> to vector<1x1x32xf32>
      %cst_62 = arith.constant dense<0.000000e+00> : vector<1x1xf32>
      %161 = vector.multi_reduction <add>, %4, %cst_62 [1] : vector<1x8x1xf32> to vector<1x1xf32>
      %162 = vector.shape_cast %161 : vector<1x1xf32> to vector<1x1x1xf32>
      %cst_63 = arith.constant 1.000000e+00 : f32
      %163 = vector.broadcast %cst_63 : f32 to vector<1x1x1xf32>
      %164 = arith.maximumf %162, %163 : vector<1x1x1xf32>
      %165 = vector.broadcast %164 : vector<1x1x1xf32> to vector<1x1x32xf32>
      %166 = arith.divf %160, %165 : vector<1x1x32xf32>
      %c0_64 = arith.constant 0 : index
      %c0_65 = arith.constant 0 : index
      %c0_66 = arith.constant 0 : index
      %167 = vector.load %arg18[%c0_64, %c0_65, %c0_66] : memref<1x1x32xf32, #tpu.memory_space<vmem>>, vector<1x1x32xf32>
      tpu.vector_store %arg18[%c0_64, %c0_65, %c0_66], %166 {strides = array<i32>} : memref<1x1x32xf32, #tpu.memory_space<vmem>>, vector<1x1x32xf32>,
    } else {
    }
    return
  }
  func.func @transform_0(%arg0: i32, %arg1: i32) -> (i32, i32, i32) {
    %c0_i32 = arith.constant 0 : i32
    %c0_i32_0 = arith.constant 0 : i32
    %c0_i32_1 = arith.constant 0 : i32
    return %arg0, %c0_i32, %c0_i32_0 : i32, i32, i32
  }
  func.func @transform_1(%arg0: i32, %arg1: i32) -> (i32, i32, i32) {
    %c0_i32 = arith.constant 0 : i32
    %c0_i32_0 = arith.constant 0 : i32
    %c0_i32_1 = arith.constant 0 : i32
    return %arg0, %c0_i32, %c0_i32_0 : i32, i32, i32
  }
  func.func @transform_2(%arg0: i32, %arg1: i32) -> (i32, i32, i32) {
    %c0_i32 = arith.constant 0 : i32
    %c0_i32_0 = arith.constant 0 : i32
    %c0_i32_1 = arith.constant 0 : i32
    return %arg0, %c0_i32, %c0_i32_0 : i32, i32, i32
  }
  func.func @transform_3(%arg0: i32, %arg1: i32) -> (i32, i32, i32) {
    %c0_i32 = arith.constant 0 : i32
    %c0_i32_0 = arith.constant 0 : i32
    %c0_i32_1 = arith.constant 0 : i32
    %c0_i32_2 = arith.constant 0 : i32
    return %c0_i32, %c0_i32_0, %c0_i32_1 : i32, i32, i32
  }
  func.func @transform_4(%arg0: i32, %arg1: i32) -> (i32, i32, i32) {
    %c0_i32 = arith.constant 0 : i32
    %c0_i32_0 = arith.constant 0 : i32
    %c0_i32_1 = arith.constant 0 : i32
    %c0_i32_2 = arith.constant 0 : i32
    return %c0_i32, %c0_i32_0, %c0_i32_1 : i32, i32, i32
  }
  func.func @transform_5(%arg0: i32, %arg1: i32) -> (i32, i32, i32) {
    %c0_i32 = arith.constant 0 : i32
    %c0_i32_0 = arith.constant 0 : i32
    %c0_i32_1 = arith.constant 0 : i32
    %c0_i32_2 = arith.constant 0 : i32
    return %c0_i32, %c0_i32_0, %c0_i32_1 : i32, i32, i32
  }
  func.func @transform_6(%arg0: i32, %arg1: i32) -> (i32, i32, i32) {
    %c0_i32 = arith.constant 0 : i32
    %c0_i32_0 = arith.constant 0 : i32
    %c0_i32_1 = arith.constant 0 : i32
    %c0_i32_2 = arith.constant 0 : i32
    return %c0_i32, %c0_i32_0, %c0_i32_1 : i32, i32, i32
  }
  func.func @transform_7(%arg0: i32, %arg1: i32) -> (i32, i32, i32) {
    %c0_i32 = arith.constant 0 : i32
    %c0_i32_0 = arith.constant 0 : i32
    %c0_i32_1 = arith.constant 0 : i32
    %c0_i32_2 = arith.constant 0 : i32
    return %c0_i32, %c0_i32_0, %c0_i32_1 : i32, i32, i32
  }
  func.func @transform_8(%arg0: i32, %arg1: i32) -> (i32, i32, i32) {
    %c0_i32 = arith.constant 0 : i32
    %c0_i32_0 = arith.constant 0 : i32
    %c0_i32_1 = arith.constant 0 : i32
    %c0_i32_2 = arith.constant 0 : i32
    return %c0_i32, %c0_i32_0, %c0_i32_1 : i32, i32, i32
  }
  func.func @transform_9(%arg0: i32, %arg1: i32) -> (i32, i32, i32) {
    %c0_i32 = arith.constant 0 : i32
    %c0_i32_0 = arith.constant 0 : i32
    %c0_i32_1 = arith.constant 0 : i32
    %c0_i32_2 = arith.constant 0 : i32
    return %c0_i32, %c0_i32_0, %c0_i32_1 : i32, i32, i32
  }
  func.func @transform_10(%arg0: i32, %arg1: i32) -> (i32, i32, i32) {
    %c0_i32 = arith.constant 0 : i32
    %c0_i32_0 = arith.constant 0 : i32
    %c0_i32_1 = arith.constant 0 : i32
    %c0_i32_2 = arith.constant 0 : i32
    return %c0_i32, %c0_i32_0, %c0_i32_1 : i32, i32, i32
  }
  func.func @transform_11(%arg0: i32, %arg1: i32) -> (i32, i32, i32) {
    %c0_i32 = arith.constant 0 : i32
    %c0_i32_0 = arith.constant 0 : i32
    %c0_i32_1 = arith.constant 0 : i32
    %c0_i32_2 = arith.constant 0 : i32
    return %c0_i32, %c0_i32_0, %c0_i32_1 : i32, i32, i32
  }
  func.func @transform_12(%arg0: i32, %arg1: i32) -> (i32, i32, i32) {
    %c0_i32 = arith.constant 0 : i32
    %c0_i32_0 = arith.constant 0 : i32
    %c0_i32_1 = arith.constant 0 : i32
    %c0_i32_2 = arith.constant 0 : i32
    return %c0_i32, %c0_i32_0, %c0_i32_1 : i32, i32, i32
  }
  func.func @transform_13(%arg0: i32, %arg1: i32) -> (i32, i32, i32) {
    %c0_i32 = arith.constant 0 : i32
    %c0_i32_0 = arith.constant 0 : i32
    %c0_i32_1 = arith.constant 0 : i32
    %c0_i32_2 = arith.constant 0 : i32
    return %c0_i32, %c0_i32_0, %c0_i32_1 : i32, i32, i32
  }
  func.func @transform_14(%arg0: i32, %arg1: i32) -> (i32, i32, i32) {
    %c0_i32 = arith.constant 0 : i32
    %c0_i32_0 = arith.constant 0 : i32
    %c0_i32_1 = arith.constant 0 : i32
    %c0_i32_2 = arith.constant 0 : i32
    return %c0_i32, %c0_i32_0, %c0_i32_1 : i32, i32, i32
  }
  func.func @transform_15(%arg0: i32, %arg1: i32) -> (i32, i32, i32, i32, i32) {
    %c0_i32 = arith.constant 0 : i32
    %c0_i32_0 = arith.constant 0 : i32
    %c0_i32_1 = arith.constant 0 : i32
    %c0_i32_2 = arith.constant 0 : i32
    return %arg1, %arg0, %c0_i32, %c0_i32_0, %c0_i32_1 : i32, i32, i32, i32, i32
  }
  func.func @transform_16(%arg0: i32, %arg1: i32) -> (i32, i32, i32) {
    %c0_i32 = arith.constant 0 : i32
    %c0_i32_0 = arith.constant 0 : i32
    %c0_i32_1 = arith.constant 0 : i32
    return %arg0, %c0_i32, %c0_i32_0 : i32, i32, i32
  }
}

</mosaic_0001>

<llo_original>
// kernel: tpu_custom_call.1
$region0: #{tpu_custom_call.1}
  #allocation0 [shape = 'u32[]', space=smem, size = 0x4, offset = 0x4, fixed_abs, tag = 'smem constant byte address 0x4 - core index']
  #allocation1 [shape = 'u32[72,128]{1,0:T(1,128)}', space=vmem, size = 0x9000, scoped, tag = 'internal scratch']
  #allocation2 [shape = 'f32[1,8,32]{2,1,0:T(8,128)}', space=vmem, size = 0x1000, scoped, tag = 'scratch operand']
  #allocation3 [shape = 'f32[1,8,8]{2,1,0:T(8,128)}', space=vmem, size = 0x1000, scoped, tag = 'scratch operand']
  %s0 = inlined_call_operand.vmem [shape: f32[2,8,32], index: 0, kind: input, shape index: {}]
  %s1 = inlined_call_operand.hbm [shape: bf16[2,8,8], index: 1, kind: input, shape index: {}]
  %s2 = inlined_call_operand.vmem [shape: f32[2,8,1], index: 2, kind: input, shape index: {}]
  %s3 = inlined_call_operand.vmem [shape: bf16[2,32,96], index: 3, kind: input, shape index: {}]
  %s4 = inlined_call_operand.vmem [shape: f32[2,1,96], index: 4, kind: input, shape index: {}]
  %s5 = inlined_call_operand.vmem [shape: bf16[2,32,32], index: 5, kind: input, shape index: {}]
  %s6 = inlined_call_operand.vmem [shape: f32[2,1,32], index: 6, kind: input, shape index: {}]
  %s7 = inlined_call_operand.vmem [shape: f32[2,1,32], index: 7, kind: input, shape index: {}]
  %s8 = inlined_call_operand.vmem [shape: f32[2,1,32], index: 8, kind: input, shape index: {}]
  %s9 = inlined_call_operand.vmem [shape: bf16[2,32,64], index: 9, kind: input, shape index: {}]
  %s10 = inlined_call_operand.vmem [shape: f32[2,1,64], index: 10, kind: input, shape index: {}]
  %s11 = inlined_call_operand.vmem [shape: bf16[2,64,32], index: 11, kind: input, shape index: {}]
  %s12 = inlined_call_operand.vmem [shape: f32[2,1,32], index: 12, kind: input, shape index: {}]
  %s13 = inlined_call_operand.hbm [shape: f32[2,1,32], index: 13, kind: input, shape index: {}]
  %s14 = inlined_call_operand.vmem [shape: f32[2,1,32], index: 14, kind: input, shape index: {}]
  %s15 = inlined_call_operand.hbm [shape: bf16[2,2,4,8,8], index: 15, kind: output, shape index: {0}]
  %s16 = inlined_call_operand.hbm [shape: f32[2,1,32], index: 16, kind: output, shape index: {1}]
  %17 = xla_tuple %s15, %s16
  %s18 = sld [smem:[#allocation0]]
  $region117: #{tpu_custom_call.1} parent=0
    _
  %s20 = ssub.s32 1, %s18
  %s21 = scalar_select 0, %s20, %s18
  $region1: #{tpu_custom_call.1} parent=0
    #allocation4 [shape = 'u8[4096]{0}', space=vmem, size = 0x1000, scoped, tag = 'input window, operand 1']
    #allocation5 [shape = 's32[2]{0}', space=sflag, size = 0x8, scoped, tag = 'scoped memory for tpu_custom_call.1']
    #allocation6 [shape = 's32[2]{0}', space=sflag, size = 0x8, scoped, tag = 'scoped memory for tpu_custom_call.1']
    #allocation7 [shape = 'u8[1024]{0}', space=vmem, size = 0x400, scoped, tag = 'input window, operand 13, single buffered']
    #allocation8 [shape = 's32[1]{0}', space=sflag, size = 0x4, scoped, tag = 'scoped memory for tpu_custom_call.1']
    #allocation9 [shape = 'u8[16384]{0}', space=vmem, size = 0x4000, scoped, tag = 'output window, operand 0']
    #allocation10 [shape = 'u8[1024]{0}', space=vmem, size = 0x400, scoped, tag = 'output window, operand 1']
    #allocation11 [shape = 's32[2]{0}', space=sflag, size = 0x8, scoped, tag = 'scoped memory for tpu_custom_call.1']
    %22 = vsyncpa [#allocation5], 0
    %s23 = scalar_lea.sflag [#allocation5], 1
    %24 = vsyncpa %s23, 0
    %25 = vsyncpa [#allocation8], 0
    %26 = vsyncpa [#allocation6], 0
    %s27 = scalar_lea.sflag [#allocation6], 1
    %28 = vsyncpa %s27, 0
    %29 = vsyncpa [#allocation11], 0
    %s30 = scalar_lea.sflag [#allocation11], 1
    %31 = vsyncpa %s30, 0
    loop: start=0, step=1, limit=6
    $region2: #{tpu_custom_call.1} parent=1 // loop_pre_header
      _
    $region3: #{tpu_custom_call.1} parent=1 // loop_header
      %s33 = sphi 0, %s37
      %p34 = scmp.ge.s32.totalorder %s33, 6
      %s40 = sphi 0, %s52
      %s41 = sphi 0, %s48
      %s42 = sphi 0, %s40
      %s43 = sphi 0, %s41
      %s44 = sphi 0, %s42
      %s45 = sphi 0, %s43
      %s55 = sphi 0, %s57
      %s58 = sphi 0, %s55
      %s59 = sphi 0, %s58
      %s75 = sphi 0, %s59
      %s81 = sphi 0, %s83
      %s84 = sphi 0, %s81
      %s85 = sphi 0, %s84
      %s101 = sphi 0, %s85
      %s107 = sphi 0, %s109
      %s110 = sphi 0, %s107
      %s111 = sphi 0, %s110
      %s127 = sphi 0, %s111
      %s131 = sphi 0, %s131
      %s133 = sphi 0, %s131
      %s134 = sphi 0, %s133
      %s148 = sphi 0, %s134
      %s152 = sphi 0, %s152
      %s154 = sphi 0, %s152
      %s155 = sphi 0, %s154
      %s169 = sphi 0, %s155
      %s173 = sphi 0, %s173
      %s175 = sphi 0, %s173
      %s176 = sphi 0, %s175
      %s190 = sphi 0, %s176
      %s194 = sphi 0, %s194
      %s196 = sphi 0, %s194
      %s197 = sphi 0, %s196
      %s211 = sphi 0, %s197
      %s215 = sphi 0, %s215
      %s217 = sphi 0, %s215
      %s218 = sphi 0, %s217
      %s232 = sphi 0, %s218
      %s236 = sphi 0, %s236
      %s238 = sphi 0, %s236
      %s239 = sphi 0, %s238
      %s253 = sphi 0, %s239
      %s257 = sphi 0, %s257
      %s259 = sphi 0, %s257
      %s260 = sphi 0, %s259
      %s274 = sphi 0, %s260
      %s278 = sphi 0, %s278
      %s280 = sphi 0, %s278
      %s281 = sphi 0, %s280
      %s295 = sphi 0, %s281
      %s299 = sphi 0, %s299
      %s301 = sphi 0, %s299
      %s302 = sphi 0, %s301
      %s316 = sphi 0, %s302
      %s320 = sphi 0, %s320
      %s322 = sphi 0, %s320
      %s323 = sphi 0, %s322
      %s337 = sphi 0, %s323
      %s341 = sphi 0, %s341
      %s343 = sphi 0, %s341
      %s344 = sphi 0, %s343
      %s358 = sphi 0, %s344
      %s362 = sphi 0, %s362
      %s364 = sphi 0, %s362
      %s365 = sphi 0, %s364
      %s379 = sphi 0, %s365
      %s387 = sphi 0, %s389
      %s390 = sphi 0, %s387
      %s391 = sphi 0, %s390
      %s407 = sphi 0, %s391
      %s413 = sphi 0, %s415
      %s416 = sphi 0, %s413
      %s417 = sphi 0, %s416
      %s433 = sphi 0, %s417
    $region4: #{tpu_custom_call.1} parent=1 // loop_header_branch
      %36 = sbr.rel (%p34) target = $region8
    $region5: #{tpu_custom_call.1} parent=1 // loop_body
      %s38 = ssub.s32 %s33, 1
      %s39 = ssub.s32 %s33, 2
      %s46 = sadd.s32 1, %s41
      %p47 = scmp.ge.s32.totalorder %s46, 2
      %s48 = scalar_select %p47, 0, %s46
      %s49 = sadd.s32 1, %s40
      %s50 = scalar_select %p47, %s49, %s40
      %p51 = scmp.ge.s32.totalorder %s50, 2
      %s52 = scalar_select %p51, 0, %s50
      %s53 = ssub.s32 %s40, %s52
      %p54 = scmp.eq.s32.totalorder %s53, 0
      %s56 = sadd.s32 %s55, 1
      %s57 = scalar_select %p54, %s55, %s56
      %p60 = pneg %p54
      %p61 = scmp.eq.s32.totalorder %s33, 3
      %p62 = por %p60, %p61
      %p63 = scmp.ne.s32.totalorder %s55, %s58
      %p64 = scmp.eq.s32.totalorder %s33, 0
      %p65 = por %p63, %p64
      %p66 = scmp.ne.s32.totalorder %s55, %s58
      %p67 = scmp.eq.s32.totalorder %s38, 3
      %p68 = por %p66, %p67
      %p69 = scmp.ne.s32.totalorder %s58, %s59
      %p70 = scmp.eq.s32.totalorder %s38, 0
      %p71 = por %p69, %p70
      %p72 = scmp.ne.s32.totalorder %s58, %s59
      %p73 = scmp.eq.s32.totalorder %s39, 3
      %p74 = por %p72, %p73
      %p76 = scmp.ne.s32.totalorder %s59, %s75
      %p77 = scmp.eq.s32.totalorder %s39, 0
      %p78 = por %p76, %p77
      %s79 = ssub.s32 %s40, %s52
      %p80 = scmp.eq.s32.totalorder %s79, 0
      %s82 = sadd.s32 %s81, 1
      %s83 = scalar_select %p80, %s81, %s82
      %p86 = pneg %p80
      %p87 = scmp.eq.s32.totalorder %s33, 3
      %p88 = por %p86, %p87
      %p89 = scmp.ne.s32.totalorder %s81, %s84
      %p90 = scmp.eq.s32.totalorder %s33, 0
      %p91 = por %p89, %p90
      %p92 = scmp.ne.s32.totalorder %s81, %s84
      %p93 = scmp.eq.s32.totalorder %s38, 3
      %p94 = por %p92, %p93
      %p95 = scmp.ne.s32.totalorder %s84, %s85
      %p96 = scmp.eq.s32.totalorder %s38, 0
      %p97 = por %p95, %p96
      %p98 = scmp.ne.s32.totalorder %s84, %s85
      %p99 = scmp.eq.s32.totalorder %s39, 3
      %p100 = por %p98, %p99
      %p102 = scmp.ne.s32.totalorder %s85, %s101
      %p103 = scmp.eq.s32.totalorder %s39, 0
      %p104 = por %p102, %p103
      %s105 = ssub.s32 %s40, %s52
      %p106 = scmp.eq.s32.totalorder %s105, 0
      %s108 = sadd.s32 %s107, 1
      %s109 = scalar_select %p106, %s107, %s108
      %p112 = pneg %p106
      %p113 = scmp.eq.s32.totalorder %s33, 3
      %p114 = por %p112, %p113
      %p115 = scmp.ne.s32.totalorder %s107, %s110
      %p116 = scmp.eq.s32.totalorder %s33, 0
      %p117 = por %p115, %p116
      %p118 = scmp.ne.s32.totalorder %s107, %s110
      %p119 = scmp.eq.s32.totalorder %s38, 3
      %p120 = por %p118, %p119
      %p121 = scmp.ne.s32.totalorder %s110, %s111
      %p122 = scmp.eq.s32.totalorder %s38, 0
      %p123 = por %p121, %p122
      %p124 = scmp.ne.s32.totalorder %s110, %s111
      %p125 = scmp.eq.s32.totalorder %s39, 3
      %p126 = por %p124, %p125
      %p128 = scmp.ne.s32.totalorder %s111, %s127
      %p129 = scmp.eq.s32.totalorder %s39, 0
      %p130 = por %p128, %p129
      %s132 = sadd.s32 %s131, 1
      %p135 = scmp.eq.s32.totalorder %s33, 3
      %p136 = scmp.ne.s32.totalorder %s131, %s133
      %p137 = scmp.eq.s32.totalorder %s33, 0
      %p138 = por %p136, %p137
      %p139 = scmp.ne.s32.totalorder %s131, %s133
      %p140 = scmp.eq.s32.totalorder %s38, 3
      %p141 = por %p139, %p140
      %p142 = scmp.ne.s32.totalorder %s133, %s134
      %p143 = scmp.eq.s32.totalorder %s38, 0
      %p144 = por %p142, %p143
      %p145 = scmp.ne.s32.totalorder %s133, %s134
      %p146 = scmp.eq.s32.totalorder %s39, 3
      %p147 = por %p145, %p146
      %p149 = scmp.ne.s32.totalorder %s134, %s148
      %p150 = scmp.eq.s32.totalorder %s39, 0
      %p151 = por %p149, %p150
      %s153 = sadd.s32 %s152, 1
      %p156 = scmp.eq.s32.totalorder %s33, 3
      %p157 = scmp.ne.s32.totalorder %s152, %s154
      %p158 = scmp.eq.s32.totalorder %s33, 0
      %p159 = por %p157, %p158
      %p160 = scmp.ne.s32.totalorder %s152, %s154
      %p161 = scmp.eq.s32.totalorder %s38, 3
      %p162 = por %p160, %p161
      %p163 = scmp.ne.s32.totalorder %s154, %s155
      %p164 = scmp.eq.s32.totalorder %s38, 0
      %p165 = por %p163, %p164
      %p166 = scmp.ne.s32.totalorder %s154, %s155
      %p167 = scmp.eq.s32.totalorder %s39, 3
      %p168 = por %p166, %p167
      %p170 = scmp.ne.s32.totalorder %s155, %s169
      %p171 = scmp.eq.s32.totalorder %s39, 0
      %p172 = por %p170, %p171
      %s174 = sadd.s32 %s173, 1
      %p177 = scmp.eq.s32.totalorder %s33, 3
      %p178 = scmp.ne.s32.totalorder %s173, %s175
      %p179 = scmp.eq.s32.totalorder %s33, 0
      %p180 = por %p178, %p179
      %p181 = scmp.ne.s32.totalorder %s173, %s175
      %p182 = scmp.eq.s32.totalorder %s38, 3
      %p183 = por %p181, %p182
      %p184 = scmp.ne.s32.totalorder %s175, %s176
      %p185 = scmp.eq.s32.totalorder %s38, 0
      %p186 = por %p184, %p185
      %p187 = scmp.ne.s32.totalorder %s175, %s176
      %p188 = scmp.eq.s32.totalorder %s39, 3
      %p189 = por %p187, %p188
      %p191 = scmp.ne.s32.totalorder %s176, %s190
      %p192 = scmp.eq.s32.totalorder %s39, 0
      %p193 = por %p191, %p192
      %s195 = sadd.s32 %s194, 1
      %p198 = scmp.eq.s32.totalorder %s33, 3
      %p199 = scmp.ne.s32.totalorder %s194, %s196
      %p200 = scmp.eq.s32.totalorder %s33, 0
      %p201 = por %p199, %p200
      %p202 = scmp.ne.s32.totalorder %s194, %s196
      %p203 = scmp.eq.s32.totalorder %s38, 3
      %p204 = por %p202, %p203
      %p205 = scmp.ne.s32.totalorder %s196, %s197
      %p206 = scmp.eq.s32.totalorder %s38, 0
      %p207 = por %p205, %p206
      %p208 = scmp.ne.s32.totalorder %s196, %s197
      %p209 = scmp.eq.s32.totalorder %s39, 3
      %p210 = por %p208, %p209
      %p212 = scmp.ne.s32.totalorder %s197, %s211
      %p213 = scmp.eq.s32.totalorder %s39, 0
      %p214 = por %p212, %p213
      %s216 = sadd.s32 %s215, 1
      %p219 = scmp.eq.s32.totalorder %s33, 3
      %p220 = scmp.ne.s32.totalorder %s215, %s217
      %p221 = scmp.eq.s32.totalorder %s33, 0
      %p222 = por %p220, %p221
      %p223 = scmp.ne.s32.totalorder %s215, %s217
      %p224 = scmp.eq.s32.totalorder %s38, 3
      %p225 = por %p223, %p224
      %p226 = scmp.ne.s32.totalorder %s217, %s218
      %p227 = scmp.eq.s32.totalorder %s38, 0
      %p228 = por %p226, %p227
      %p229 = scmp.ne.s32.totalorder %s217, %s218
      %p230 = scmp.eq.s32.totalorder %s39, 3
      %p231 = por %p229, %p230
      %p233 = scmp.ne.s32.totalorder %s218, %s232
      %p234 = scmp.eq.s32.totalorder %s39, 0
      %p235 = por %p233, %p234
      %s237 = sadd.s32 %s236, 1
      %p240 = scmp.eq.s32.totalorder %s33, 3
      %p241 = scmp.ne.s32.totalorder %s236, %s238
      %p242 = scmp.eq.s32.totalorder %s33, 0
      %p243 = por %p241, %p242
      %p244 = scmp.ne.s32.totalorder %s236, %s238
      %p245 = scmp.eq.s32.totalorder %s38, 3
      %p246 = por %p244, %p245
      %p247 = scmp.ne.s32.totalorder %s238, %s239
      %p248 = scmp.eq.s32.totalorder %s38, 0
      %p249 = por %p247, %p248
      %p250 = scmp.ne.s32.totalorder %s238, %s239
      %p251 = scmp.eq.s32.totalorder %s39, 3
      %p252 = por %p250, %p251
      %p254 = scmp.ne.s32.totalorder %s239, %s253
      %p255 = scmp.eq.s32.totalorder %s39, 0
      %p256 = por %p254, %p255
      %s258 = sadd.s32 %s257, 1
      %p261 = scmp.eq.s32.totalorder %s33, 3
      %p262 = scmp.ne.s32.totalorder %s257, %s259
      %p263 = scmp.eq.s32.totalorder %s33, 0
      %p264 = por %p262, %p263
      %p265 = scmp.ne.s32.totalorder %s257, %s259
      %p266 = scmp.eq.s32.totalorder %s38, 3
      %p267 = por %p265, %p266
      %p268 = scmp.ne.s32.totalorder %s259, %s260
      %p269 = scmp.eq.s32.totalorder %s38, 0
      %p270 = por %p268, %p269
      %p271 = scmp.ne.s32.totalorder %s259, %s260
      %p272 = scmp.eq.s32.totalorder %s39, 3
      %p273 = por %p271, %p272
      %p275 = scmp.ne.s32.totalorder %s260, %s274
      %p276 = scmp.eq.s32.totalorder %s39, 0
      %p277 = por %p275, %p276
      %s279 = sadd.s32 %s278, 1
      %p282 = scmp.eq.s32.totalorder %s33, 3
      %p283 = scmp.ne.s32.totalorder %s278, %s280
      %p284 = scmp.eq.s32.totalorder %s33, 0
      %p285 = por %p283, %p284
      %p286 = scmp.ne.s32.totalorder %s278, %s280
      %p287 = scmp.eq.s32.totalorder %s38, 3
      %p288 = por %p286, %p287
      %p289 = scmp.ne.s32.totalorder %s280, %s281
      %p290 = scmp.eq.s32.totalorder %s38, 0
      %p291 = por %p289, %p290
      %p292 = scmp.ne.s32.totalorder %s280, %s281
      %p293 = scmp.eq.s32.totalorder %s39, 3
      %p294 = por %p292, %p293
      %p296 = scmp.ne.s32.totalorder %s281, %s295
      %p297 = scmp.eq.s32.totalorder %s39, 0
      %p298 = por %p296, %p297
      %s300 = sadd.s32 %s299, 1
      %p303 = scmp.eq.s32.totalorder %s33, 3
      %p304 = scmp.ne.s32.totalorder %s299, %s301
      %p305 = scmp.eq.s32.totalorder %s33, 0
      %p306 = por %p304, %p305
      %p307 = scmp.ne.s32.totalorder %s299, %s301
      %p308 = scmp.eq.s32.totalorder %s38, 3
      %p309 = por %p307, %p308
      %p310 = scmp.ne.s32.totalorder %s301, %s302
      %p311 = scmp.eq.s32.totalorder %s38, 0
      %p312 = por %p310, %p311
      %p313 = scmp.ne.s32.totalorder %s301, %s302
      %p314 = scmp.eq.s32.totalorder %s39, 3
      %p315 = por %p313, %p314
      %p317 = scmp.ne.s32.totalorder %s302, %s316
      %p318 = scmp.eq.s32.totalorder %s39, 0
      %p319 = por %p317, %p318
      %s321 = sadd.s32 %s320, 1
      %p324 = scmp.eq.s32.totalorder %s33, 3
      %p325 = scmp.ne.s32.totalorder %s320, %s322
      %p326 = scmp.eq.s32.totalorder %s33, 0
      %p327 = por %p325, %p326
      %p328 = scmp.ne.s32.totalorder %s320, %s322
      %p329 = scmp.eq.s32.totalorder %s38, 3
      %p330 = por %p328, %p329
      %p331 = scmp.ne.s32.totalorder %s322, %s323
      %p332 = scmp.eq.s32.totalorder %s38, 0
      %p333 = por %p331, %p332
      %p334 = scmp.ne.s32.totalorder %s322, %s323
      %p335 = scmp.eq.s32.totalorder %s39, 3
      %p336 = por %p334, %p335
      %p338 = scmp.ne.s32.totalorder %s323, %s337
      %p339 = scmp.eq.s32.totalorder %s39, 0
      %p340 = por %p338, %p339
      %s342 = sadd.s32 %s341, 1
      %p345 = scmp.eq.s32.totalorder %s33, 3
      %p346 = scmp.ne.s32.totalorder %s341, %s343
      %p347 = scmp.eq.s32.totalorder %s33, 0
      %p348 = por %p346, %p347
      %p349 = scmp.ne.s32.totalorder %s341, %s343
      %p350 = scmp.eq.s32.totalorder %s38, 3
      %p351 = por %p349, %p350
      %p352 = scmp.ne.s32.totalorder %s343, %s344
      %p353 = scmp.eq.s32.totalorder %s38, 0
      %p354 = por %p352, %p353
      %p355 = scmp.ne.s32.totalorder %s343, %s344
      %p356 = scmp.eq.s32.totalorder %s39, 3
      %p357 = por %p355, %p356
      %p359 = scmp.ne.s32.totalorder %s344, %s358
      %p360 = scmp.eq.s32.totalorder %s39, 0
      %p361 = por %p359, %p360
      %s363 = sadd.s32 %s362, 1
      %p366 = scmp.eq.s32.totalorder %s33, 3
      %p367 = scmp.ne.s32.totalorder %s362, %s364
      %p368 = scmp.eq.s32.totalorder %s33, 0
      %p369 = por %p367, %p368
      %p370 = scmp.ne.s32.totalorder %s362, %s364
      %p371 = scmp.eq.s32.totalorder %s38, 3
      %p372 = por %p370, %p371
      %p373 = scmp.ne.s32.totalorder %s364, %s365
      %p374 = scmp.eq.s32.totalorder %s38, 0
      %p375 = por %p373, %p374
      %p376 = scmp.ne.s32.totalorder %s364, %s365
      %p377 = scmp.eq.s32.totalorder %s39, 3
      %p378 = por %p376, %p377
      %p380 = scmp.ne.s32.totalorder %s365, %s379
      %p381 = scmp.eq.s32.totalorder %s39, 0
      %p382 = por %p380, %p381
      %s383 = ssub.s32 %s41, %s48
      %s384 = ssub.s32 %s40, %s52
      %s385 = sor.u32 %s383, %s384
      %p386 = scmp.eq.s32.totalorder %s385, 0
      %s388 = sadd.s32 %s387, 1
      %s389 = scalar_select %p386, %s387, %s388
      %p392 = pneg %p386
      %p393 = scmp.eq.s32.totalorder %s33, 3
      %p394 = por %p392, %p393
      %p395 = scmp.ne.s32.totalorder %s387, %s390
      %p396 = scmp.eq.s32.totalorder %s33, 0
      %p397 = por %p395, %p396
      %p398 = scmp.ne.s32.totalorder %s387, %s390
      %p399 = scmp.eq.s32.totalorder %s38, 3
      %p400 = por %p398, %p399
      %p401 = scmp.ne.s32.totalorder %s390, %s391
      %p402 = scmp.eq.s32.totalorder %s38, 0
      %p403 = por %p401, %p402
      %p404 = scmp.ne.s32.totalorder %s390, %s391
      %p405 = scmp.eq.s32.totalorder %s39, 3
      %p406 = por %p404, %p405
      %p408 = scmp.ne.s32.totalorder %s391, %s407
      %p409 = scmp.eq.s32.totalorder %s39, 0
      %p410 = por %p408, %p409
      %s411 = ssub.s32 %s40, %s52
      %p412 = scmp.eq.s32.totalorder %s411, 0
      %s414 = sadd.s32 %s413, 1
      %s415 = scalar_select %p412, %s413, %s414
      %p418 = pneg %p412
      %p419 = scmp.eq.s32.totalorder %s33, 3
      %p420 = por %p418, %p419
      %p421 = scmp.ne.s32.totalorder %s413, %s416
      %p422 = scmp.eq.s32.totalorder %s33, 0
      %p423 = por %p421, %p422
      %p424 = scmp.ne.s32.totalorder %s413, %s416
      %p425 = scmp.eq.s32.totalorder %s38, 3
      %p426 = por %p424, %p425
      %p427 = scmp.ne.s32.totalorder %s416, %s417
      %p428 = scmp.eq.s32.totalorder %s38, 0
      %p429 = por %p427, %p428
      %p430 = scmp.ne.s32.totalorder %s416, %s417
      %p431 = scmp.eq.s32.totalorder %s39, 3
      %p432 = por %p430, %p431
      %p434 = scmp.ne.s32.totalorder %s417, %s433
      %p435 = scmp.eq.s32.totalorder %s39, 0
      %p436 = por %p434, %p435
      %p437 = scmp.le.s32.totalorder 1, %s33
      %p438 = scmp.lt.s32.totalorder %s33, 5
      %p439 = pnand %p437, %p438
      %p440 = pneg %p439
      // Predicated region
      $region9: #{tpu_custom_call.1} parent=5 // pred_check
        _
      $region10: #{tpu_custom_call.1} parent=5 // pred_check_branch
        %442 = sbr.rel (%p439) target = $region12
      $region11: #{tpu_custom_call.1} parent=5 // pred_region
        %s443 = ssub.s32 %s33, 1
        // Predicated region
        $region13: #{tpu_custom_call.1} parent=11 // pred_check
          %p444 = pneg %p144
        $region14: #{tpu_custom_call.1} parent=11 // pred_check_branch
          %446 = sbr.rel (%p444) target = $region16
        $region15: #{tpu_custom_call.1} parent=11 // pred_region
          _
        $region16: #{tpu_custom_call.1} parent=11 // pred_fallthru
          _
        // Predicated region
        $region17: #{tpu_custom_call.1} parent=11 // pred_check
          %p447 = pneg %p165
        $region18: #{tpu_custom_call.1} parent=11 // pred_check_branch
          %449 = sbr.rel (%p447) target = $region20
        $region19: #{tpu_custom_call.1} parent=11 // pred_region
          _
        $region20: #{tpu_custom_call.1} parent=11 // pred_fallthru
          _
        // Predicated region
        $region21: #{tpu_custom_call.1} parent=11 // pred_check
          %p450 = pneg %p186
        $region22: #{tpu_custom_call.1} parent=11 // pred_check_branch
          %452 = sbr.rel (%p450) target = $region24
        $region23: #{tpu_custom_call.1} parent=11 // pred_region
          _
        $region24: #{tpu_custom_call.1} parent=11 // pred_fallthru
          _
        // Predicated region
        $region25: #{tpu_custom_call.1} parent=11 // pred_check
          %p453 = pneg %p207
        $region26: #{tpu_custom_call.1} parent=11 // pred_check_branch
          %455 = sbr.rel (%p453) target = $region28
        $region27: #{tpu_custom_call.1} parent=11 // pred_region
          _
        $region28: #{tpu_custom_call.1} parent=11 // pred_fallthru
          _
        // Predicated region
        $region29: #{tpu_custom_call.1} parent=11 // pred_check
          %p456 = pneg %p228
        $region30: #{tpu_custom_call.1} parent=11 // pred_check_branch
          %458 = sbr.rel (%p456) target = $region32
        $region31: #{tpu_custom_call.1} parent=11 // pred_region
          _
        $region32: #{tpu_custom_call.1} parent=11 // pred_fallthru
          _
        // Predicated region
        $region33: #{tpu_custom_call.1} parent=11 // pred_check
          %p459 = pneg %p249
        $region34: #{tpu_custom_call.1} parent=11 // pred_check_branch
          %461 = sbr.rel (%p459) target = $region36
        $region35: #{tpu_custom_call.1} parent=11 // pred_region
          _
        $region36: #{tpu_custom_call.1} parent=11 // pred_fallthru
          _
        // Predicated region
        $region37: #{tpu_custom_call.1} parent=11 // pred_check
          %p462 = pneg %p270
        $region38: #{tpu_custom_call.1} parent=11 // pred_check_branch
          %464 = sbr.rel (%p462) target = $region40
        $region39: #{tpu_custom_call.1} parent=11 // pred_region
          _
        $region40: #{tpu_custom_call.1} parent=11 // pred_fallthru
          _
        // Predicated region
        $region41: #{tpu_custom_call.1} parent=11 // pred_check
          %p465 = pneg %p291
        $region42: #{tpu_custom_call.1} parent=11 // pred_check_branch
          %467 = sbr.rel (%p465) target = $region44
        $region43: #{tpu_custom_call.1} parent=11 // pred_region
          _
        $region44: #{tpu_custom_call.1} parent=11 // pred_fallthru
          _
        // Predicated region
        $region45: #{tpu_custom_call.1} parent=11 // pred_check
          %p468 = pneg %p312
        $region46: #{tpu_custom_call.1} parent=11 // pred_check_branch
          %470 = sbr.rel (%p468) target = $region48
        $region47: #{tpu_custom_call.1} parent=11 // pred_region
          _
        $region48: #{tpu_custom_call.1} parent=11 // pred_fallthru
          _
        // Predicated region
        $region49: #{tpu_custom_call.1} parent=11 // pred_check
          %p471 = pneg %p333
        $region50: #{tpu_custom_call.1} parent=11 // pred_check_branch
          %473 = sbr.rel (%p471) target = $region52
        $region51: #{tpu_custom_call.1} parent=11 // pred_region
          _
        $region52: #{tpu_custom_call.1} parent=11 // pred_fallthru
          _
        // Predicated region
        $region53: #{tpu_custom_call.1} parent=11 // pred_check
          %p474 = pneg %p354
        $region54: #{tpu_custom_call.1} parent=11 // pred_check_branch
          %476 = sbr.rel (%p474) target = $region56
        $region55: #{tpu_custom_call.1} parent=11 // pred_region
          %478 = vsyncadd [#allocation8], 0
          %s479 = sshll.u32 %s13, 4
          %s480 = int_to_ptr.hbm [resolvable:$true] %s479
          %s481 = sshll.u32 [#allocation7], 4
          %s482 = int_to_ptr.vmem [resolvable:$true] %s481
          %487 = dma.hbm_to_vmem [thread:$0]  %s480, 32, %s482, [#allocation8], 16, 16, 1
        $region56: #{tpu_custom_call.1} parent=11 // pred_fallthru
          _
        // Predicated region
        $region57: #{tpu_custom_call.1} parent=11 // pred_check
          %p488 = pneg %p375
        $region58: #{tpu_custom_call.1} parent=11 // pred_check_branch
          %490 = sbr.rel (%p488) target = $region60
        $region59: #{tpu_custom_call.1} parent=11 // pred_region
          _
        $region60: #{tpu_custom_call.1} parent=11 // pred_fallthru
          _
      $region12: #{tpu_custom_call.1} parent=5 // pred_fallthru
        _
      %p491 = scmp.lt.s32.totalorder %s33, 4
      // Predicated region
      $region61: #{tpu_custom_call.1} parent=5 // pred_check
        %p492 = pneg %p491
      $region62: #{tpu_custom_call.1} parent=5 // pred_check_branch
        %494 = sbr.rel (%p492) target = $region64
      $region63: #{tpu_custom_call.1} parent=5 // pred_region
        // Predicated region
        $region65: #{tpu_custom_call.1} parent=63 // pred_check
          %p495 = pneg %p65
        $region66: #{tpu_custom_call.1} parent=63 // pred_check_branch
          %497 = sbr.rel (%p495) target = $region68
        $region67: #{tpu_custom_call.1} parent=63 // pred_region
          %p498 = scmp.lt.s32.totalorder %s40, 1
          %s499 = scalar_select %p498, %s40, 1
          %s500 = smul.addr %s499, 8
          %s501 = scalar_lea.vmem %s0, %s500
        $region68: #{tpu_custom_call.1} parent=63 // pred_fallthru
          _
        // Predicated region
        $region69: #{tpu_custom_call.1} parent=63 // pred_check
          %p502 = pneg %p91
        $region70: #{tpu_custom_call.1} parent=63 // pred_check_branch
          %504 = sbr.rel (%p502) target = $region72
        $region71: #{tpu_custom_call.1} parent=63 // pred_region
          %s505 = sand.u32 %s81, 1
          %s506 = scalar_lea.sflag [#allocation5], %s505
          %s507 = sand.u32 %s81, 1
          %s508 = smul.addr %s507, 4
          %s509 = scalar_lea.vmem [#allocation4], %s508
          %511 = vsyncadd %s506, 0
          %s512 = smul.addr %s40, 4
          %s513 = scalar_lea.hbm %s1, %s512
          %s515 = sshll.u32 %s513, 4
          %s516 = int_to_ptr.hbm [resolvable:$true] %s515
          %s517 = sshll.u32 %s509, 4
          %s518 = int_to_ptr.vmem [resolvable:$true] %s517
          %520 = dma.hbm_to_vmem [thread:$0]  %s516, 64, %s518, %s506
        $region72: #{tpu_custom_call.1} parent=63 // pred_fallthru
          _
        // Predicated region
        $region73: #{tpu_custom_call.1} parent=63 // pred_check
          %p521 = pneg %p117
        $region74: #{tpu_custom_call.1} parent=63 // pred_check_branch
          %523 = sbr.rel (%p521) target = $region76
        $region75: #{tpu_custom_call.1} parent=63 // pred_region
          %p524 = scmp.lt.s32.totalorder %s40, 1
          %s525 = scalar_select %p524, %s40, 1
          %s526 = smul.addr %s525, 8
          %s527 = scalar_lea.vmem %s2, %s526
        $region76: #{tpu_custom_call.1} parent=63 // pred_fallthru
          _
      $region64: #{tpu_custom_call.1} parent=5 // pred_fallthru
        _
      %p528 = scmp.le.s32.totalorder 1, %s33
      %p529 = scmp.lt.s32.totalorder %s33, 5
      %p530 = pnand %p528, %p529
      %p531 = pneg %p530
      // Predicated region
      $region77: #{tpu_custom_call.1} parent=5 // pred_check
        _
      $region78: #{tpu_custom_call.1} parent=5 // pred_check_branch
        %533 = sbr.rel (%p530) target = $region80
      $region79: #{tpu_custom_call.1} parent=5 // pred_region
        %s534 = ssub.s32 %s33, 1
        %s535 = sand.u32 %s84, 1
        %s536 = scalar_lea.sflag [#allocation5], %s535
        %s537 = sand.u32 %s84, 1
        %s538 = smul.addr %s537, 4
        %s539 = scalar_lea.vmem [#allocation4], %s538
        // Predicated region
        $region81: #{tpu_custom_call.1} parent=79 // pred_check
          %p540 = pneg %p97
        $region82: #{tpu_custom_call.1} parent=79 // pred_check_branch
          %542 = sbr.rel (%p540) target = $region84
        $region83: #{tpu_custom_call.1} parent=79 // pred_region
          %544 = dma.done %s536, 64
        $region84: #{tpu_custom_call.1} parent=79 // pred_fallthru
          _
        // Predicated region
        $region85: #{tpu_custom_call.1} parent=79 // pred_check
          %p545 = pneg %p354
        $region86: #{tpu_custom_call.1} parent=79 // pred_check_branch
          %547 = sbr.rel (%p545) target = $region88
        $region87: #{tpu_custom_call.1} parent=79 // pred_region
          %549 = dma.done [#allocation8], 32
        $region88: #{tpu_custom_call.1} parent=79 // pred_fallthru
          _
        %p550 = scmp.lt.s32.totalorder %s42, 1
        %s551 = scalar_select %p550, %s42, 1
        %s552 = smul.addr %s551, 8
        %s553 = scalar_lea.vmem %s0, %s552
        %p554 = pneg %p71
        %p555 = pneg %p68
        %s556 = sand.u32 %s84, 1
        %s557 = scalar_lea.sflag [#allocation5], %s556
        %s558 = sand.u32 %s84, 1
        %s559 = smul.addr %s558, 4
        %s560 = scalar_lea.vmem [#allocation4], %s559
        %p561 = pneg %p97
        %p562 = pneg %p94
        %p563 = scmp.lt.s32.totalorder %s42, 1
        %s564 = scalar_select %p563, %s42, 1
        %s565 = smul.addr %s564, 8
        %s566 = scalar_lea.vmem %s2, %s565
        %p567 = pneg %p123
        %p568 = pneg %p120
        %p569 = pneg %p144
        %p570 = pneg %p141
        %p571 = pneg %p165
        %p572 = pneg %p162
        %p573 = pneg %p186
        %p574 = pneg %p183
        %p575 = pneg %p207
        %p576 = pneg %p204
        %p577 = pneg %p228
        %p578 = pneg %p225
        %p579 = pneg %p249
        %p580 = pneg %p246
        %p581 = pneg %p270
        %p582 = pneg %p267
        %p583 = pneg %p291
        %p584 = pneg %p288
        %p585 = pneg %p312
        %p586 = pneg %p309
        %p587 = pneg %p333
        %p588 = pneg %p330
        %p589 = pneg %p354
        %p590 = pneg %p351
        %p591 = pneg %p375
        %p592 = pneg %p372
        %p593 = pneg %p403
        %p594 = pneg %p400
        %s595 = sand.u32 %s390, 1
        %s596 = scalar_lea.sflag [#allocation6], %s595
        %s597 = sand.u32 %s390, 1
        %s598 = smul.addr %s597, 16
        %s599 = scalar_lea.vmem [#allocation9], %s598
        %p600 = pneg %p429
        %p601 = pneg %p426
        %s602 = sand.u32 %s416, 1
        %s603 = scalar_lea.sflag [#allocation11], %s602
        %s604 = sand.u32 %s416, 1
        %s605 = scalar_lea.vmem [#allocation10], %s604
        %p606 = scmp.lt.s32.totalorder %s42, 1
        %s607 = scalar_select %p606, %s42, 1
        %s608 = smul.addr %s607, 8
        %s609 = scalar_lea.vmem %s0, %s608
        %p610 = scmp.lt.s32.totalorder %s42, 1
        %s611 = scalar_select %p610, %s42, 1
        %s612 = smul.addr %s611, 8
        %s613 = scalar_lea.vmem %s2, %s612
        %p615 = scmp.eq.s32.totalorder %s43, 0
        // Predicated region
        $region89: #{tpu_custom_call.1} parent=79 // pred_check
          %p616 = pneg %p615
        $region90: #{tpu_custom_call.1} parent=79 // pred_check_branch
          %618 = sbr.rel (%p616) target = $region92
        $region91: #{tpu_custom_call.1} parent=79 // pred_region
          %v619 = vld [vmem:[%s609] sm:$0xff]
          %vm620 = vcmask 261120
          %621 = vst.msk [vmem:[#allocation2] sm:$0xff] %vm620, %v619
          %v622 = vld [vmem:[%s539] sm:$0xf]
          %v623 = vunpack.c.l.bf16 %v622
          %vm624 = vcmask 64512
          %625 = vst.msk [vmem:[#allocation3] sm:$0xff] %vm624, %v623
        $region92: #{tpu_custom_call.1} parent=79 // pred_fallthru
          _
        %v626 = vld [vmem:[#allocation2] sm:$0xff]
        %v627 = vld [vmem:[%s613] sm:$0xff]
        %v628 = vld [vmem:[#allocation3] sm:$0xff]
        %v629 = vpack.c.bf16 %v626, %v626
        %s630 = smul.u32 %s43, 4
        %s631 = smul.addr %s630, 4
        %s632 = scalar_lea.vmem %s3, %s631
        %v633 = vld [vmem:[%s632] sm:$0xf]
        %v634 = vld [vmem:[%s632 + $0x4] sm:$0xf]
        %v635 = vld [vmem:[%s632 + $0x8] sm:$0xf]
        %v636 = vld [vmem:[%s632 + $0xc] sm:$0xf]
        %s637 = scalar_lea.vmem %s4, %s43
        %v638 = vld [vmem:[%s637] sm:$0x1]
        %v640 = vperm.slane %v638, 0
        %v646 = vunpack.c.l.b16 %v633
        %v647 = vunpack.c.l.b16 %v634
        %v648 = vunpack.c.l.b16 %v635
        %v649 = vunpack.c.l.b16 %v636
        %v650 = vpack.c.b16 %v647, %v646
        %v651 = vpack.c.b16 %v649, %v648
        %vm654 = vcmask 261120
        %v656 = vsel %vm654, %v629, 0
        %658 = vmatpush.bf16.msra.mxu0 0
        %659 = vmatpush.bf16.msra.mxu0 0
        %660 = vmatpush.bf16.msra.mxu0 0
        %661 = vmatpush.bf16.msra.mxu0 0
        %662 = vmatpush.bf16.msra.mxu0 0
        %663 = vmatpush.bf16.msra.mxu0 0
        %664 = vmatpush.bf16.msra.mxu0 %v651
        %665 = vmatpush.bf16.msra.mxu0 %v650
        %666 = vmatmul.bf16.gmra.mxu0 %v656
        %v667 = vpop.f32.mrf.mxu0
        %v668 = vadd.f32 %v640, %v667
        %v669 = vpop.f32.mrf.mxu0
        %670 = vdwg.mxu0
        %v671 = vmul.f32 %v668, 0.35355338
        %673 = vrot.lane.b32.xlu0 %v671, 120
        %v674 = vpop.permute.xlu0 %673
        %676 = vrot.lane.b32.xlu0 %v671, 112
        %v677 = vpop.permute.xlu0 %676
        %679 = vrot.lane.b32.xlu0 %v671, 104
        %v680 = vpop.permute.xlu0 %679
        %v682 = vrot.slane %v677, 4
        %vm683 = vcmask 1047556
        %v684 = vsel %vm683, %v682, %v671
        %v685 = vrot.slane %v671, 4
        %v686 = vsel %vm683, %v677, %v685
        %v688 = vunpack.c.l.s4 1983009808
        %v689 = vunpack.c.0.s8 %v688
        %v690 = vperm.slane %v684, %v689
        %v692 = vunpack.c.l.s4 1983009808
        %v693 = vunpack.c.0.s8 %v692
        %v694 = vperm.slane %v686, %v693
        %v695 = vrot.slane %v680, 4
        %v696 = vsel %vm683, %v695, %v674
        %v697 = vrot.slane %v674, 4
        %v698 = vsel %vm683, %v680, %v697
        %v700 = vunpack.c.l.s4 1983009808
        %v701 = vunpack.c.0.s8 %v700
        %v702 = vperm.slane %v696, %v701
        %v704 = vunpack.c.l.s4 1983009808
        %v705 = vunpack.c.0.s8 %v704
        %v706 = vperm.slane %v698, %v705
        %v707 = vrot.slane %v702, 4
        %v708 = vsel %vm683, %v707, %v690
        %v709 = vrot.slane %v690, 4
        %v710 = vsel %vm683, %v702, %v709
        %v712 = vunpack.c.l.s4 1934713408
        %v713 = vunpack.c.0.s8 %v712
        %v714 = vperm.slane %v708, %v713
        %v716 = vunpack.c.l.s4 1934713408
        %v717 = vunpack.c.0.s8 %v716
        %v718 = vperm.slane %v710, %v717
        %v719 = vrot.slane %v706, 4
        %v720 = vsel %vm683, %v719, %v694
        %v721 = vrot.slane %v694, 4
        %v722 = vsel %vm683, %v706, %v721
        %v724 = vunpack.c.l.s4 1934713408
        %v725 = vunpack.c.0.s8 %v724
        %v726 = vperm.slane %v720, %v725
        %v728 = vunpack.c.l.s4 1934713408
        %v729 = vunpack.c.0.s8 %v728
        %v730 = vperm.slane %v722, %v729
        %v731 = vrot.slane %v714, 4
        %v732 = vsel %vm683, 0.0, %v731
        %v733 = vrot.slane %v718, 4
        %v734 = vsel %vm683, 0.0, %v733
        %v735 = vrot.slane %v726, 4
        %v736 = vsel %vm683, 0.0, %v735
        %v737 = vrot.slane %v730, 4
        %v738 = vsel %vm683, 0.0, %v737
        %v739 = vsel %vm683, %v733, %v714
        %v741 = vunpack.c.l.s4 1983009808
        %v742 = vunpack.c.0.s8 %v741
        %v743 = vperm.slane %v739, %v742
        %v744 = vrot.slane %v734, 4
        %v745 = vsel %vm683, %v744, %v732
        %v747 = vunpack.c.l.s4 1983009808
        %v748 = vunpack.c.0.s8 %v747
        %v749 = vperm.slane %v745, %v748
        %v750 = vsel %vm683, %v737, %v726
        %v752 = vunpack.c.l.s4 1983009808
        %v753 = vunpack.c.0.s8 %v752
        %v754 = vperm.slane %v750, %v753
        %v755 = vrot.slane %v738, 4
        %v756 = vsel %vm683, %v755, %v736
        %v758 = vunpack.c.l.s4 1983009808
        %v759 = vunpack.c.0.s8 %v758
        %v760 = vperm.slane %v756, %v759
        %v761 = vrot.slane %v749, 4
        %v762 = vsel %vm683, %v761, %v743
        %v763 = vrot.slane %v743, 4
        %v764 = vsel %vm683, %v749, %v763
        %v766 = vunpack.c.l.s4 1934713408
        %v767 = vunpack.c.0.s8 %v766
        %v768 = vperm.slane %v762, %v767
        %v770 = vunpack.c.l.s4 1934713408
        %v771 = vunpack.c.0.s8 %v770
        %v772 = vperm.slane %v764, %v771
        %v773 = vrot.slane %v760, 4
        %v774 = vsel %vm683, %v773, %v754
        %v775 = vrot.slane %v754, 4
        %v776 = vsel %vm683, %v760, %v775
        %v778 = vunpack.c.l.s4 1934713408
        %v779 = vunpack.c.0.s8 %v778
        %v780 = vperm.slane %v774, %v779
        %v782 = vunpack.c.l.s4 1934713408
        %v783 = vunpack.c.0.s8 %v782
        %v784 = vperm.slane %v776, %v783
        %v785 = vrot.slane %v780, 4
        %v786 = vsel %vm683, %v785, %v768
        %v787 = vrot.slane %v768, 4
        %v788 = vsel %vm683, %v780, %v787
        %v789 = vrot.slane %v784, 4
        %v790 = vsel %vm683, %v789, %v772
        %v791 = vrot.slane %v772, 4
        %v792 = vsel %vm683, %v784, %v791
        %v793 = vpack.c.bf16 %v786, %v786
        %v794 = vpack.c.bf16 %v788, %v788
        %v795 = vpack.c.bf16 %v790, %v790
        %v796 = vpack.c.bf16 %v792, %v792
        %798 = vrot.lane.b32.xlu0 %v668, 120
        %v799 = vpop.permute.xlu0 %798
        %800 = vrot.lane.b32.xlu0 %v668, 112
        %v801 = vpop.permute.xlu0 %800
        %802 = vrot.lane.b32.xlu0 %v668, 104
        %v803 = vpop.permute.xlu0 %802
        %804 = vrot.lane.b32.xlu0 %v668, 96
        %v805 = vpop.permute.xlu0 %804
        %806 = vrot.lane.b32.xlu0 %v799, 96
        %v807 = vpop.permute.xlu0 %806
        %808 = vrot.lane.b32.xlu0 %v801, 96
        %v809 = vpop.permute.xlu0 %808
        %810 = vrot.lane.b32.xlu0 %v803, 96
        %v811 = vpop.permute.xlu0 %810
        %v816 = vrot.slane %v809, 4
        %v817 = vsel %vm683, %v816, %v805
        %v818 = vrot.slane %v805, 4
        %v819 = vsel %vm683, %v809, %v818
        %v821 = vunpack.c.l.s4 1983009808
        %v822 = vunpack.c.0.s8 %v821
        %v823 = vperm.slane %v817, %v822
        %v825 = vunpack.c.l.s4 1983009808
        %v826 = vunpack.c.0.s8 %v825
        %v827 = vperm.slane %v819, %v826
        %v828 = vrot.slane %v811, 4
        %v829 = vsel %vm683, %v828, %v807
        %v830 = vrot.slane %v807, 4
        %v831 = vsel %vm683, %v811, %v830
        %v833 = vunpack.c.l.s4 1983009808
        %v834 = vunpack.c.0.s8 %v833
        %v835 = vperm.slane %v829, %v834
        %v837 = vunpack.c.l.s4 1983009808
        %v838 = vunpack.c.0.s8 %v837
        %v839 = vperm.slane %v831, %v838
        %v840 = vrot.slane %v835, 4
        %v841 = vsel %vm683, %v840, %v823
        %v842 = vrot.slane %v823, 4
        %v843 = vsel %vm683, %v835, %v842
        %v845 = vunpack.c.l.s4 1934713408
        %v846 = vunpack.c.0.s8 %v845
        %v847 = vperm.slane %v841, %v846
        %v849 = vunpack.c.l.s4 1934713408
        %v850 = vunpack.c.0.s8 %v849
        %v851 = vperm.slane %v843, %v850
        %v852 = vrot.slane %v839, 4
        %v853 = vsel %vm683, %v852, %v827
        %v854 = vrot.slane %v827, 4
        %v855 = vsel %vm683, %v839, %v854
        %v857 = vunpack.c.l.s4 1934713408
        %v858 = vunpack.c.0.s8 %v857
        %v859 = vperm.slane %v853, %v858
        %v861 = vunpack.c.l.s4 1934713408
        %v862 = vunpack.c.0.s8 %v861
        %v863 = vperm.slane %v855, %v862
        %v864 = vrot.slane %v847, 4
        %v865 = vsel %vm683, 0.0, %v864
        %v866 = vrot.slane %v851, 4
        %v867 = vsel %vm683, 0.0, %v866
        %v868 = vrot.slane %v859, 4
        %v869 = vsel %vm683, 0.0, %v868
        %v870 = vrot.slane %v863, 4
        %v871 = vsel %vm683, 0.0, %v870
        %v872 = vsel %vm683, %v866, %v847
        %v874 = vunpack.c.l.s4 1983009808
        %v875 = vunpack.c.0.s8 %v874
        %v876 = vperm.slane %v872, %v875
        %v877 = vrot.slane %v867, 4
        %v878 = vsel %vm683, %v877, %v865
        %v880 = vunpack.c.l.s4 1983009808
        %v881 = vunpack.c.0.s8 %v880
        %v882 = vperm.slane %v878, %v881
        %v883 = vsel %vm683, %v870, %v859
        %v885 = vunpack.c.l.s4 1983009808
        %v886 = vunpack.c.0.s8 %v885
        %v887 = vperm.slane %v883, %v886
        %v888 = vrot.slane %v871, 4
        %v889 = vsel %vm683, %v888, %v869
        %v891 = vunpack.c.l.s4 1983009808
        %v892 = vunpack.c.0.s8 %v891
        %v893 = vperm.slane %v889, %v892
        %v894 = vrot.slane %v882, 4
        %v895 = vsel %vm683, %v894, %v876
        %v896 = vrot.slane %v876, 4
        %v897 = vsel %vm683, %v882, %v896
        %v899 = vunpack.c.l.s4 1934713408
        %v900 = vunpack.c.0.s8 %v899
        %v901 = vperm.slane %v895, %v900
        %v903 = vunpack.c.l.s4 1934713408
        %v904 = vunpack.c.0.s8 %v903
        %v905 = vperm.slane %v897, %v904
        %v906 = vrot.slane %v893, 4
        %v907 = vsel %vm683, %v906, %v887
        %v908 = vrot.slane %v887, 4
        %v909 = vsel %vm683, %v893, %v908
        %v911 = vunpack.c.l.s4 1934713408
        %v912 = vunpack.c.0.s8 %v911
        %v913 = vperm.slane %v907, %v912
        %v915 = vunpack.c.l.s4 1934713408
        %v916 = vunpack.c.0.s8 %v915
        %v917 = vperm.slane %v909, %v916
        %v918 = vrot.slane %v913, 4
        %v919 = vsel %vm683, %v918, %v901
        %v920 = vrot.slane %v901, 4
        %v921 = vsel %vm683, %v913, %v920
        %v922 = vrot.slane %v917, 4
        %v923 = vsel %vm683, %v922, %v905
        %v924 = vrot.slane %v905, 4
        %v925 = vsel %vm683, %v917, %v924
        %v926 = vpack.c.bf16 %v919, %v919
        %v927 = vpack.c.bf16 %v921, %v921
        %v928 = vpack.c.bf16 %v923, %v923
        %v929 = vpack.c.bf16 %v925, %v925
        %930 = vrot.lane.b32.xlu0 %v668, 64
        %v931 = vpop.permute.xlu0 %930
        %932 = vrot.lane.b32.xlu0 %v799, 64
        %v933 = vpop.permute.xlu0 %932
        %934 = vrot.lane.b32.xlu0 %v801, 64
        %v935 = vpop.permute.xlu0 %934
        %936 = vrot.lane.b32.xlu0 %v803, 64
        %v937 = vpop.permute.xlu0 %936
        %v942 = vrot.slane %v935, 4
        %v943 = vsel %vm683, %v942, %v931
        %v944 = vrot.slane %v931, 4
        %v945 = vsel %vm683, %v935, %v944
        %v947 = vunpack.c.l.s4 1983009808
        %v948 = vunpack.c.0.s8 %v947
        %v949 = vperm.slane %v943, %v948
        %v951 = vunpack.c.l.s4 1983009808
        %v952 = vunpack.c.0.s8 %v951
        %v953 = vperm.slane %v945, %v952
        %v954 = vrot.slane %v937, 4
        %v955 = vsel %vm683, %v954, %v933
        %v956 = vrot.slane %v933, 4
        %v957 = vsel %vm683, %v937, %v956
        %v959 = vunpack.c.l.s4 1983009808
        %v960 = vunpack.c.0.s8 %v959
        %v961 = vperm.slane %v955, %v960
        %v963 = vunpack.c.l.s4 1983009808
        %v964 = vunpack.c.0.s8 %v963
        %v965 = vperm.slane %v957, %v964
        %v966 = vrot.slane %v961, 4
        %v967 = vsel %vm683, %v966, %v949
        %v968 = vrot.slane %v949, 4
        %v969 = vsel %vm683, %v961, %v968
        %v971 = vunpack.c.l.s4 1934713408
        %v972 = vunpack.c.0.s8 %v971
        %v973 = vperm.slane %v967, %v972
        %v975 = vunpack.c.l.s4 1934713408
        %v976 = vunpack.c.0.s8 %v975
        %v977 = vperm.slane %v969, %v976
        %v978 = vrot.slane %v965, 4
        %v979 = vsel %vm683, %v978, %v953
        %v980 = vrot.slane %v953, 4
        %v981 = vsel %vm683, %v965, %v980
        %v983 = vunpack.c.l.s4 1934713408
        %v984 = vunpack.c.0.s8 %v983
        %v985 = vperm.slane %v979, %v984
        %v987 = vunpack.c.l.s4 1934713408
        %v988 = vunpack.c.0.s8 %v987
        %v989 = vperm.slane %v981, %v988
        %v990 = vrot.slane %v973, 4
        %v991 = vsel %vm683, 0.0, %v990
        %v992 = vrot.slane %v977, 4
        %v993 = vsel %vm683, 0.0, %v992
        %v994 = vrot.slane %v985, 4
        %v995 = vsel %vm683, 0.0, %v994
        %v996 = vrot.slane %v989, 4
        %v997 = vsel %vm683, 0.0, %v996
        %v998 = vsel %vm683, %v992, %v973
        %v1000 = vunpack.c.l.s4 1983009808
        %v1001 = vunpack.c.0.s8 %v1000
        %v1002 = vperm.slane %v998, %v1001
        %v1003 = vrot.slane %v993, 4
        %v1004 = vsel %vm683, %v1003, %v991
        %v1006 = vunpack.c.l.s4 1983009808
        %v1007 = vunpack.c.0.s8 %v1006
        %v1008 = vperm.slane %v1004, %v1007
        %v1009 = vsel %vm683, %v996, %v985
        %v1011 = vunpack.c.l.s4 1983009808
        %v1012 = vunpack.c.0.s8 %v1011
        %v1013 = vperm.slane %v1009, %v1012
        %v1014 = vrot.slane %v997, 4
        %v1015 = vsel %vm683, %v1014, %v995
        %v1017 = vunpack.c.l.s4 1983009808
        %v1018 = vunpack.c.0.s8 %v1017
        %v1019 = vperm.slane %v1015, %v1018
        %v1020 = vrot.slane %v1008, 4
        %v1021 = vsel %vm683, %v1020, %v1002
        %v1022 = vrot.slane %v1002, 4
        %v1023 = vsel %vm683, %v1008, %v1022
        %v1025 = vunpack.c.l.s4 1934713408
        %v1026 = vunpack.c.0.s8 %v1025
        %v1027 = vperm.slane %v1021, %v1026
        %v1029 = vunpack.c.l.s4 1934713408
        %v1030 = vunpack.c.0.s8 %v1029
        %v1031 = vperm.slane %v1023, %v1030
        %v1032 = vrot.slane %v1019, 4
        %v1033 = vsel %vm683, %v1032, %v1013
        %v1034 = vrot.slane %v1013, 4
        %v1035 = vsel %vm683, %v1019, %v1034
        %v1037 = vunpack.c.l.s4 1934713408
        %v1038 = vunpack.c.0.s8 %v1037
        %v1039 = vperm.slane %v1033, %v1038
        %v1041 = vunpack.c.l.s4 1934713408
        %v1042 = vunpack.c.0.s8 %v1041
        %v1043 = vperm.slane %v1035, %v1042
        %v1044 = vrot.slane %v1039, 4
        %v1045 = vsel %vm683, %v1044, %v1027
        %v1046 = vrot.slane %v1027, 4
        %v1047 = vsel %vm683, %v1039, %v1046
        %v1048 = vrot.slane %v1043, 4
        %v1049 = vsel %vm683, %v1048, %v1031
        %v1050 = vrot.slane %v1031, 4
        %v1051 = vsel %vm683, %v1043, %v1050
        %v1052 = vpack.c.bf16 %v1045, %v1045
        %v1053 = vpack.c.bf16 %v1047, %v1047
        %v1054 = vpack.c.bf16 %v1049, %v1049
        %v1055 = vpack.c.bf16 %v1051, %v1051
        %vm1056 = vcmask 64512
        %v1058 = vsel %vm1056, %v793, 0
        %v1061 = vsel %vm1056, %v926, 0
        %1063 = vmatpush.bf16.xpose.msra.mxu0 0
        %1064 = vmatpush.bf16.xpose.msra.mxu0 0
        %1065 = vmatpush.bf16.xpose.msra.mxu0 0
        %1066 = vmatpush.bf16.xpose.msra.mxu0 0
        %1067 = vmatpush.bf16.xpose.msra.mxu0 0
        %1068 = vmatpush.bf16.xpose.msra.mxu0 0
        %1069 = vmatpush.bf16.xpose.msra.mxu0 0
        %1070 = vmatpush.bf16.xpose.msra.mxu0 %v1061
        %1071 = vmatmul.bf16.gmra.mxu0 %v1058
        %v1072 = vpop.f32.mrf.mxu0
        %v1073 = vadd.f32 0.0, %v1072
        %v1074 = vpop.f32.mrf.mxu0
        %1075 = vdwg.mxu0
        %v1077 = vsel %vm1056, %v794, 0
        %v1080 = vsel %vm1056, %v927, 0
        %1082 = vmatpush.bf16.xpose.msra.mxu0 0
        %1083 = vmatpush.bf16.xpose.msra.mxu0 0
        %1084 = vmatpush.bf16.xpose.msra.mxu0 0
        %1085 = vmatpush.bf16.xpose.msra.mxu0 0
        %1086 = vmatpush.bf16.xpose.msra.mxu0 0
        %1087 = vmatpush.bf16.xpose.msra.mxu0 0
        %1088 = vmatpush.bf16.xpose.msra.mxu0 0
        %1089 = vmatpush.bf16.xpose.msra.mxu0 %v1080
        %1090 = vmatmul.bf16.gmra.mxu0 %v1077
        %v1091 = vpop.f32.mrf.mxu0
        %v1092 = vadd.f32 0.0, %v1091
        %v1093 = vpop.f32.mrf.mxu0
        %1094 = vdwg.mxu0
        %v1096 = vsel %vm1056, %v795, 0
        %v1099 = vsel %vm1056, %v928, 0
        %1101 = vmatpush.bf16.xpose.msra.mxu0 0
        %1102 = vmatpush.bf16.xpose.msra.mxu0 0
        %1103 = vmatpush.bf16.xpose.msra.mxu0 0
        %1104 = vmatpush.bf16.xpose.msra.mxu0 0
        %1105 = vmatpush.bf16.xpose.msra.mxu0 0
        %1106 = vmatpush.bf16.xpose.msra.mxu0 0
        %1107 = vmatpush.bf16.xpose.msra.mxu0 0
        %1108 = vmatpush.bf16.xpose.msra.mxu0 %v1099
        %1109 = vmatmul.bf16.gmra.mxu0 %v1096
        %v1110 = vpop.f32.mrf.mxu0
        %v1111 = vadd.f32 0.0, %v1110
        %v1112 = vpop.f32.mrf.mxu0
        %1113 = vdwg.mxu0
        %v1115 = vsel %vm1056, %v796, 0
        %v1118 = vsel %vm1056, %v929, 0
        %1120 = vmatpush.bf16.xpose.msra.mxu0 0
        %1121 = vmatpush.bf16.xpose.msra.mxu0 0
        %1122 = vmatpush.bf16.xpose.msra.mxu0 0
        %1123 = vmatpush.bf16.xpose.msra.mxu0 0
        %1124 = vmatpush.bf16.xpose.msra.mxu0 0
        %1125 = vmatpush.bf16.xpose.msra.mxu0 0
        %1126 = vmatpush.bf16.xpose.msra.mxu0 0
        %1127 = vmatpush.bf16.xpose.msra.mxu0 %v1118
        %1128 = vmatmul.bf16.gmra.mxu0 %v1115
        %v1129 = vpop.f32.mrf.mxu0
        %v1130 = vadd.f32 0.0, %v1129
        %v1131 = vpop.f32.mrf.mxu0
        %1132 = vdwg.mxu0
        %v1133 = vadd.f32 %v1073, %v628
        %v1134 = vadd.f32 %v1092, %v628
        %v1135 = vadd.f32 %v1111, %v628
        %v1136 = vadd.f32 %v1130, %v628
        %v1137 = vsel %vm1056, %v1133, -inf
        %1138 = vmax.xlane.f32.xlu0 %v1137
        %v1139 = vpop.xlane.xlu0 %1138
        %v1140 = vsel %vm1056, %v1134, -inf
        %1141 = vmax.xlane.f32.xlu0 %v1140
        %v1142 = vpop.xlane.xlu0 %1141
        %v1143 = vsel %vm1056, %v1135, -inf
        %1144 = vmax.xlane.f32.xlu0 %v1143
        %v1145 = vpop.xlane.xlu0 %1144
        %v1146 = vsel %vm1056, %v1136, -inf
        %1147 = vmax.xlane.f32.xlu0 %v1146
        %v1148 = vpop.xlane.xlu0 %1147
        %v1149 = vsub.f32 %v1133, %v1139
        %v1150 = vsub.f32 %v1134, %v1142
        %v1151 = vsub.f32 %v1135, %v1145
        %v1152 = vsub.f32 %v1136, %v1148
        %v1153 = vmul.f32 %v1149, 1.442695
        %v1154 = vpow.pop %v1153
        %v1155 = vmul.f32 %v1150, 1.442695
        %v1156 = vpow.pop %v1155
        %v1157 = vmul.f32 %v1151, 1.442695
        %v1158 = vpow.pop %v1157
        %v1159 = vmul.f32 %v1152, 1.442695
        %v1160 = vpow.pop %v1159
        %v1161 = vsel %vm1056, %v1154, 0.0
        %1162 = vadd.xlane.f32.xlu0 %v1161
        %v1163 = vpop.xlane.xlu0 %1162
        %v1164 = vsel %vm1056, %v1156, 0.0
        %1165 = vadd.xlane.f32.xlu0 %v1164
        %v1166 = vpop.xlane.xlu0 %1165
        %v1167 = vsel %vm1056, %v1158, 0.0
        %1168 = vadd.xlane.f32.xlu0 %v1167
        %v1169 = vpop.xlane.xlu0 %1168
        %v1170 = vsel %vm1056, %v1160, 0.0
        %1171 = vadd.xlane.f32.xlu0 %v1170
        %v1172 = vpop.xlane.xlu0 %1171
        %v1173 = vrcp.pop %v1163
        %v1174 = vrcp.pop %v1166
        %v1175 = vrcp.pop %v1169
        %v1176 = vrcp.pop %v1172
        %v1177 = vmul.f32 %v1154, %v1173
        %v1178 = vmul.f32 %v1156, %v1174
        %v1179 = vmul.f32 %v1158, %v1175
        %v1180 = vmul.f32 %v1160, %v1176
        %v1181 = vpack.c.bf16 %v1177, %v1177
        %v1182 = vpack.c.bf16 %v1178, %v1178
        %v1183 = vpack.c.bf16 %v1179, %v1179
        %v1184 = vpack.c.bf16 %v1180, %v1180
        %vm1185 = vcmask 60416
        %1186 = vst.msk [vmem:[%s599] sm:$0xf] %vm1185, %v1181
        %1187 = vst.msk [vmem:[%s599 + $0x4] sm:$0xf] %vm1185, %v1182
        %1188 = vst.msk [vmem:[%s599 + $0x8] sm:$0xf] %vm1185, %v1183
        %1189 = vst.msk [vmem:[%s599 + $0xc] sm:$0xf] %vm1185, %v1184
        %v1191 = vsel %vm1056, %v1181, 0
        %vm1193 = vcmask 1043456
        %v1195 = vsel %vm1193, %v1052, 0
        %1197 = vmatpush.bf16.msra.mxu0 0
        %1198 = vmatpush.bf16.msra.mxu0 0
        %1199 = vmatpush.bf16.msra.mxu0 0
        %1200 = vmatpush.bf16.msra.mxu0 0
        %1201 = vmatpush.bf16.msra.mxu0 0
        %1202 = vmatpush.bf16.msra.mxu0 0
        %1203 = vmatpush.bf16.msra.mxu0 0
        %1204 = vmatpush.bf16.msra.mxu0 %v1195
        %1205 = vmatmul.bf16.gmra.mxu0 %v1191
        %v1206 = vpop.f32.mrf.mxu0
        %v1207 = vadd.f32 0.0, %v1206
        %v1208 = vpop.f32.mrf.mxu0
        %1209 = vdwg.mxu0
        %v1211 = vsel %vm1056, %v1182, 0
        %v1214 = vsel %vm1193, %v1053, 0
        %1216 = vmatpush.bf16.msra.mxu0 0
        %1217 = vmatpush.bf16.msra.mxu0 0
        %1218 = vmatpush.bf16.msra.mxu0 0
        %1219 = vmatpush.bf16.msra.mxu0 0
        %1220 = vmatpush.bf16.msra.mxu0 0
        %1221 = vmatpush.bf16.msra.mxu0 0
        %1222 = vmatpush.bf16.msra.mxu0 0
        %1223 = vmatpush.bf16.msra.mxu0 %v1214
        %1224 = vmatmul.bf16.gmra.mxu0 %v1211
        %v1225 = vpop.f32.mrf.mxu0
        %v1226 = vadd.f32 0.0, %v1225
        %v1227 = vpop.f32.mrf.mxu0
        %1228 = vdwg.mxu0
        %v1230 = vsel %vm1056, %v1183, 0
        %v1233 = vsel %vm1193, %v1054, 0
        %1235 = vmatpush.bf16.msra.mxu0 0
        %1236 = vmatpush.bf16.msra.mxu0 0
        %1237 = vmatpush.bf16.msra.mxu0 0
        %1238 = vmatpush.bf16.msra.mxu0 0
        %1239 = vmatpush.bf16.msra.mxu0 0
        %1240 = vmatpush.bf16.msra.mxu0 0
        %1241 = vmatpush.bf16.msra.mxu0 0
        %1242 = vmatpush.bf16.msra.mxu0 %v1233
        %1243 = vmatmul.bf16.gmra.mxu0 %v1230
        %v1244 = vpop.f32.mrf.mxu0
        %v1245 = vadd.f32 0.0, %v1244
        %v1246 = vpop.f32.mrf.mxu0
        %1247 = vdwg.mxu0
        %v1249 = vsel %vm1056, %v1184, 0
        %v1252 = vsel %vm1193, %v1055, 0
        %1254 = vmatpush.bf16.msra.mxu0 0
        %1255 = vmatpush.bf16.msra.mxu0 0
        %1256 = vmatpush.bf16.msra.mxu0 0
        %1257 = vmatpush.bf16.msra.mxu0 0
        %1258 = vmatpush.bf16.msra.mxu0 0
        %1259 = vmatpush.bf16.msra.mxu0 0
        %1260 = vmatpush.bf16.msra.mxu0 0
        %1261 = vmatpush.bf16.msra.mxu0 %v1252
        %1262 = vmatmul.bf16.gmra.mxu0 %v1249
        %v1263 = vpop.f32.mrf.mxu0
        %v1264 = vadd.f32 0.0, %v1263
        %v1265 = vpop.f32.mrf.mxu0
        %1266 = vdwg.mxu0
        %v1267 = vrot.slane %v1245, 4
        %v1268 = vsel %vm683, %v1267, %v1207
        %v1269 = vrot.slane %v1207, 4
        %v1270 = vsel %vm683, %v1245, %v1269
        %v1272 = vunpack.c.l.s4 1983009808
        %v1273 = vunpack.c.0.s8 %v1272
        %v1274 = vperm.slane %v1268, %v1273
        %v1276 = vunpack.c.l.s4 1983009808
        %v1277 = vunpack.c.0.s8 %v1276
        %v1278 = vperm.slane %v1270, %v1277
        %v1279 = vrot.slane %v1264, 4
        %v1280 = vsel %vm683, %v1279, %v1226
        %v1281 = vrot.slane %v1226, 4
        %v1282 = vsel %vm683, %v1264, %v1281
        %v1284 = vunpack.c.l.s4 1983009808
        %v1285 = vunpack.c.0.s8 %v1284
        %v1286 = vperm.slane %v1280, %v1285
        %v1288 = vunpack.c.l.s4 1983009808
        %v1289 = vunpack.c.0.s8 %v1288
        %v1290 = vperm.slane %v1282, %v1289
        %v1291 = vrot.slane %v1286, 4
        %v1292 = vsel %vm683, %v1291, %v1274
        %v1293 = vrot.slane %v1274, 4
        %v1294 = vsel %vm683, %v1286, %v1293
        %v1296 = vunpack.c.l.s4 1934713408
        %v1297 = vunpack.c.0.s8 %v1296
        %v1298 = vperm.slane %v1292, %v1297
        %v1300 = vunpack.c.l.s4 1934713408
        %v1301 = vunpack.c.0.s8 %v1300
        %v1302 = vperm.slane %v1294, %v1301
        %v1303 = vrot.slane %v1290, 4
        %v1304 = vsel %vm683, %v1303, %v1278
        %v1305 = vrot.slane %v1278, 4
        %v1306 = vsel %vm683, %v1290, %v1305
        %v1308 = vunpack.c.l.s4 1934713408
        %v1309 = vunpack.c.0.s8 %v1308
        %v1310 = vperm.slane %v1304, %v1309
        %v1312 = vunpack.c.l.s4 1934713408
        %v1313 = vunpack.c.0.s8 %v1312
        %v1314 = vperm.slane %v1306, %v1313
        %v1315 = vrot.slane %v1298, 4
        %v1316 = vsel %vm683, 0.0, %v1315
        %v1317 = vrot.slane %v1302, 4
        %v1318 = vsel %vm683, 0.0, %v1317
        %v1319 = vrot.slane %v1310, 4
        %v1320 = vsel %vm683, 0.0, %v1319
        %v1321 = vrot.slane %v1314, 4
        %v1322 = vsel %vm683, 0.0, %v1321
        %v1323 = vsel %vm683, %v1317, %v1298
        %v1325 = vunpack.c.l.s4 1983009808
        %v1326 = vunpack.c.0.s8 %v1325
        %v1327 = vperm.slane %v1323, %v1326
        %v1328 = vrot.slane %v1318, 4
        %v1329 = vsel %vm683, %v1328, %v1316
        %v1331 = vunpack.c.l.s4 1983009808
        %v1332 = vunpack.c.0.s8 %v1331
        %v1333 = vperm.slane %v1329, %v1332
        %v1334 = vsel %vm683, %v1321, %v1310
        %v1336 = vunpack.c.l.s4 1983009808
        %v1337 = vunpack.c.0.s8 %v1336
        %v1338 = vperm.slane %v1334, %v1337
        %v1339 = vrot.slane %v1322, 4
        %v1340 = vsel %vm683, %v1339, %v1320
        %v1342 = vunpack.c.l.s4 1983009808
        %v1343 = vunpack.c.0.s8 %v1342
        %v1344 = vperm.slane %v1340, %v1343
        %v1345 = vrot.slane %v1333, 4
        %v1346 = vsel %vm683, %v1345, %v1327
        %v1347 = vrot.slane %v1327, 4
        %v1348 = vsel %vm683, %v1333, %v1347
        %v1350 = vunpack.c.l.s4 1934713408
        %v1351 = vunpack.c.0.s8 %v1350
        %v1352 = vperm.slane %v1346, %v1351
        %v1354 = vunpack.c.l.s4 1934713408
        %v1355 = vunpack.c.0.s8 %v1354
        %v1356 = vperm.slane %v1348, %v1355
        %v1357 = vrot.slane %v1344, 4
        %v1358 = vsel %vm683, %v1357, %v1338
        %v1359 = vrot.slane %v1338, 4
        %v1360 = vsel %vm683, %v1344, %v1359
        %v1362 = vunpack.c.l.s4 1934713408
        %v1363 = vunpack.c.0.s8 %v1362
        %v1364 = vperm.slane %v1358, %v1363
        %v1366 = vunpack.c.l.s4 1934713408
        %v1367 = vunpack.c.0.s8 %v1366
        %v1368 = vperm.slane %v1360, %v1367
        %v1369 = vrot.slane %v1364, 4
        %v1370 = vsel %vm683, %v1369, %v1352
        %v1371 = vrot.slane %v1352, 4
        %v1372 = vsel %vm683, %v1364, %v1371
        %v1373 = vrot.slane %v1368, 4
        %v1374 = vsel %vm683, %v1373, %v1356
        %v1375 = vrot.slane %v1356, 4
        %v1376 = vsel %vm683, %v1368, %v1375
        %1378 = vrot.lane.b32.xlu0 %v1372, 8
        %v1379 = vpop.permute.xlu0 %1378
        %1382 = vrot.lane.b32.xlu0 %v1374, 16
        %v1383 = vpop.permute.xlu0 %1382
        %1386 = vrot.lane.b32.xlu0 %v1376, 24
        %v1387 = vpop.permute.xlu0 %1386
        %v1389 = vsel %vm1056, %v1370, %v1379
        %vm1390 = vcmask 130048
        %v1391 = vsel %vm1390, %v1389, %v1383
        %vm1392 = vcmask 195584
        %v1393 = vsel %vm1392, %v1391, %v1387
        %v1394 = vpack.c.bf16 %v1393, %v1393
        %s1395 = smul.addr %s630, 4
        %s1396 = scalar_lea.vmem %s5, %s1395
        %v1397 = vld [vmem:[%s1396] sm:$0xf]
        %v1398 = vld [vmem:[%s1396 + $0x4] sm:$0xf]
        %v1399 = vld [vmem:[%s1396 + $0x8] sm:$0xf]
        %v1400 = vld [vmem:[%s1396 + $0xc] sm:$0xf]
        %s1401 = scalar_lea.vmem %s6, %s43
        %v1402 = vld [vmem:[%s1401] sm:$0x1]
        %v1404 = vperm.slane %v1402, 0
        %v1410 = vunpack.c.l.b16 %v1397
        %v1411 = vunpack.c.l.b16 %v1398
        %v1412 = vunpack.c.l.b16 %v1399
        %v1413 = vunpack.c.l.b16 %v1400
        %v1414 = vpack.c.b16 %v1411, %v1410
        %v1415 = vpack.c.b16 %v1413, %v1412
        %v1419 = vsel %vm654, %v1394, 0
        %1421 = vmatpush.bf16.msra.mxu0 0
        %1422 = vmatpush.bf16.msra.mxu0 0
        %1423 = vmatpush.bf16.msra.mxu0 0
        %1424 = vmatpush.bf16.msra.mxu0 0
        %1425 = vmatpush.bf16.msra.mxu0 0
        %1426 = vmatpush.bf16.msra.mxu0 0
        %1427 = vmatpush.bf16.msra.mxu0 %v1415
        %1428 = vmatpush.bf16.msra.mxu0 %v1414
        %1429 = vmatmul.bf16.gmra.mxu0 %v1419
        %v1430 = vpop.f32.mrf.mxu0
        %v1431 = vadd.f32 %v1404, %v1430
        %v1432 = vpop.f32.mrf.mxu0
        %1433 = vdwg.mxu0
        %1435 = vset.pattern.permute.xlu0 0
        %1436 = vperm.xlu0 %1435, %v627
        %v1437 = vpop.permute.xlu0 %1436
        %v1439 = vmul.f32 %v1431, %v1437
        %v1440 = vadd.f32 %v626, %v1439
        %v1441 = vsel %vm654, %v1440, 0.0
        %1442 = vadd.xlane.f32.xlu0 %v1441
        %v1443 = vpop.xlane.xlu0 %1442
        %v1444 = vrcp.pop 32.0
        %v1445 = vmul.f32 32.0, %v1444
        %v1446 = vsub.f32 1.0, %v1445
        %v1447 = vmul.f32 %v1444, %v1446
        %v1448 = vadd.f32 %v1444, %v1447
        %vm1449 = vweird.f32 %v1444
        %v1450 = vsel %vm1449, %v1444, %v1448
        %v1451 = vmul.f32 %v1443, %v1450
        %v1452 = vsub.f32 %v1440, %v1451
        %v1453 = vmul.f32 %v1452, %v1452
        %v1454 = vsel %vm654, %v1453, 0.0
        %1455 = vadd.xlane.f32.xlu0 %v1454
        %v1456 = vpop.xlane.xlu0 %1455
        %v1457 = vmul.f32 %v1456, %v1450
        %v1458 = vadd.f32 %v1457, 1e-05
        %v1459 = vrsqrt.pop %v1458
        %v1460 = vmul.f32 %v1459, %v1458
        %v1461 = vmul.f32 %v1460, %v1459
        %v1462 = vmul.f32 0.5, %v1461
        %v1463 = vsub.f32 1.5, %v1462
        %v1464 = vmul.f32 %v1459, %v1463
        %vm1465 = vweird.f32 %v1458
        %vm1466 = vweird.f32 %v1459
        %vm1467 = vmor %vm1465, %vm1466
        %v1468 = vsel %vm1467, %v1459, %v1464
        %v1469 = vmul.f32 %v1452, %v1468
        %s1470 = scalar_lea.vmem %s7, %s43
        %v1471 = vld [vmem:[%s1470] sm:$0x1]
        %v1473 = vperm.slane %v1471, 0
        %v1475 = vmul.f32 %v1469, %v1473
        %s1476 = scalar_lea.vmem %s8, %s43
        %v1477 = vld [vmem:[%s1476] sm:$0x1]
        %v1479 = vperm.slane %v1477, 0
        %v1481 = vadd.f32 %v1475, %v1479
        %v1482 = vpack.c.bf16 %v1481, %v1481
        %s1483 = smul.addr %s630, 4
        %s1484 = scalar_lea.vmem %s9, %s1483
        %v1485 = vld [vmem:[%s1484] sm:$0xf]
        %v1486 = vld [vmem:[%s1484 + $0x4] sm:$0xf]
        %v1487 = vld [vmem:[%s1484 + $0x8] sm:$0xf]
        %v1488 = vld [vmem:[%s1484 + $0xc] sm:$0xf]
        %s1489 = scalar_lea.vmem %s10, %s43
        %v1490 = vld [vmem:[%s1489] sm:$0x1]
        %v1492 = vperm.slane %v1490, 0
        %v1498 = vunpack.c.l.b16 %v1485
        %v1499 = vunpack.c.l.b16 %v1486
        %v1500 = vunpack.c.l.b16 %v1487
        %v1501 = vunpack.c.l.b16 %v1488
        %v1502 = vpack.c.b16 %v1499, %v1498
        %v1503 = vpack.c.b16 %v1501, %v1500
        %v1507 = vsel %vm654, %v1482, 0
        %1509 = vmatpush.bf16.msra.mxu0 0
        %1510 = vmatpush.bf16.msra.mxu0 0
        %1511 = vmatpush.bf16.msra.mxu0 0
        %1512 = vmatpush.bf16.msra.mxu0 0
        %1513 = vmatpush.bf16.msra.mxu0 0
        %1514 = vmatpush.bf16.msra.mxu0 0
        %1515 = vmatpush.bf16.msra.mxu0 %v1503
        %1516 = vmatpush.bf16.msra.mxu0 %v1502
        %1517 = vmatmul.bf16.gmra.mxu0 %v1507
        %v1518 = vpop.f32.mrf.mxu0
        %v1519 = vadd.f32 %v1492, %v1518
        %v1520 = vpop.f32.mrf.mxu0
        %1521 = vdwg.mxu0
        %v1522 = vmax.f32 %v1519, 0.0
        %v1523 = vpack.c.bf16 %v1522, %v1522
        %s1524 = smul.u32 %s43, 8
        %s1525 = smul.addr %s1524, 4
        %s1526 = scalar_lea.vmem %s11, %s1525
        %v1527 = vld [vmem:[%s1526] sm:$0xf]
        %v1528 = vld [vmem:[%s1526 + $0x4] sm:$0xf]
        %v1529 = vld [vmem:[%s1526 + $0x8] sm:$0xf]
        %v1530 = vld [vmem:[%s1526 + $0xc] sm:$0xf]
        %v1531 = vld [vmem:[%s1526 + $0x10] sm:$0xf]
        %v1532 = vld [vmem:[%s1526 + $0x14] sm:$0xf]
        %v1533 = vld [vmem:[%s1526 + $0x18] sm:$0xf]
        %v1534 = vld [vmem:[%s1526 + $0x1c] sm:$0xf]
        %s1535 = scalar_lea.vmem %s12, %s43
        %v1536 = vld [vmem:[%s1535] sm:$0x1]
        %v1538 = vperm.slane %v1536, 0
        %v1548 = vunpack.c.l.b16 %v1527
        %v1549 = vunpack.c.l.b16 %v1528
        %v1550 = vunpack.c.l.b16 %v1529
        %v1551 = vunpack.c.l.b16 %v1530
        %v1552 = vunpack.c.l.b16 %v1531
        %v1553 = vunpack.c.l.b16 %v1532
        %v1554 = vunpack.c.l.b16 %v1533
        %v1555 = vunpack.c.l.b16 %v1534
        %v1556 = vpack.c.b16 %v1549, %v1548
        %v1557 = vpack.c.b16 %v1551, %v1550
        %v1558 = vpack.c.b16 %v1553, %v1552
        %v1559 = vpack.c.b16 %v1555, %v1554
        %vm1564 = vcmask 523264
        %v1566 = vsel %vm1564, %v1523, 0
        %1568 = vmatpush.bf16.msra.mxu0 0
        %1569 = vmatpush.bf16.msra.mxu0 0
        %1570 = vmatpush.bf16.msra.mxu0 0
        %1571 = vmatpush.bf16.msra.mxu0 0
        %1572 = vmatpush.bf16.msra.mxu0 %v1559
        %1573 = vmatpush.bf16.msra.mxu0 %v1558
        %1574 = vmatpush.bf16.msra.mxu0 %v1557
        %1575 = vmatpush.bf16.msra.mxu0 %v1556
        %1576 = vmatmul.bf16.gmra.mxu0 %v1566
        %v1577 = vpop.f32.mrf.mxu0
        %v1578 = vadd.f32 %v1538, %v1577
        %v1579 = vpop.f32.mrf.mxu0
        %1580 = vdwg.mxu0
        %v1581 = vadd.f32 %v1481, %v1578
        %v1582 = vsel %vm654, %v1581, 0.0
        %1583 = vadd.xlane.f32.xlu0 %v1582
        %v1584 = vpop.xlane.xlu0 %1583
        %v1585 = vmul.f32 %v1584, %v1450
        %v1586 = vsub.f32 %v1581, %v1585
        %v1587 = vmul.f32 %v1586, %v1586
        %v1588 = vsel %vm654, %v1587, 0.0
        %1589 = vadd.xlane.f32.xlu0 %v1588
        %v1590 = vpop.xlane.xlu0 %1589
        %v1591 = vmul.f32 %v1590, %v1450
        %v1592 = vadd.f32 %v1591, 1e-05
        %v1593 = vrsqrt.pop %v1592
        %v1594 = vmul.f32 %v1593, %v1592
        %v1595 = vmul.f32 %v1594, %v1593
        %v1596 = vmul.f32 0.5, %v1595
        %v1597 = vsub.f32 1.5, %v1596
        %v1598 = vmul.f32 %v1593, %v1597
        %vm1599 = vweird.f32 %v1592
        %vm1600 = vweird.f32 %v1593
        %vm1601 = vmor %vm1599, %vm1600
        %v1602 = vsel %vm1601, %v1593, %v1598
        %v1603 = vmul.f32 %v1586, %v1602
        %s1604 = scalar_lea.vmem [#allocation7], %s43
        %v1605 = vld [vmem:[%s1604] sm:$0x1]
        %v1607 = vperm.slane %v1605, 0
        %v1609 = vmul.f32 %v1603, %v1607
        %s1610 = scalar_lea.vmem %s14, %s43
        %v1611 = vld [vmem:[%s1610] sm:$0x1]
        %v1613 = vperm.slane %v1611, 0
        %v1615 = vadd.f32 %v1609, %v1613
        %1616 = vst.msk [vmem:[#allocation2] sm:$0xff] %vm654, %v1615
        %p1617 = scmp.eq.s32.totalorder %s43, 1
        // Predicated region
        $region93: #{tpu_custom_call.1} parent=79 // pred_check
          %p1618 = pneg %p1617
        $region94: #{tpu_custom_call.1} parent=79 // pred_check_branch
          %1620 = sbr.rel (%p1618) target = $region96
        $region95: #{tpu_custom_call.1} parent=79 // pred_region
          %v1621 = vmul.f32 %v1615, %v1437
          %v1622 = vsel %vm654, %v1621, 0.0
          %v1623 = vrot.slane %v1622, 4
          %v1624 = vadd.f32 %v1622, %v1623
          %v1625 = vrot.slane %v1624, 2
          %v1626 = vadd.f32 %v1624, %v1625
          %v1627 = vrot.slane %v1626, 1
          %v1628 = vadd.f32 %v1626, %v1627
          %vm1629 = vcmask 7168
          %v1630 = vsel %vm1629, %v627, 0.0
          %v1631 = vrot.slane %v1630, 4
          %v1632 = vadd.f32 %v1630, %v1631
          %v1633 = vrot.slane %v1632, 2
          %v1634 = vadd.f32 %v1632, %v1633
          %v1635 = vrot.slane %v1634, 1
          %v1636 = vadd.f32 %v1634, %v1635
          %v1637 = vmax.f32 %v1636, 1.0
          %1639 = vset.pattern.permute.xlu0 0
          %1640 = vperm.xlu0 %1639, %v1637
          %v1641 = vpop.permute.xlu0 %1640
          %v1643 = vrcp.pop %v1641
          %v1644 = vmul.f32 %v1641, %v1643
          %v1645 = vsub.f32 1.0, %v1644
          %v1646 = vmul.f32 %v1643, %v1645
          %v1647 = vadd.f32 %v1643, %v1646
          %vm1648 = vweird.f32 %v1641
          %vm1649 = vweird.f32 %v1643
          %vm1650 = vmor %vm1648, %vm1649
          %v1651 = vsel %vm1650, %v1643, %v1647
          %v1652 = vand.u32 2147483647, %v1641
          %vm1653 = vcmp.eq.f32.partialorder %v1652, 8.507059e+37
          %v1654 = vand.u32 %v1641, 2147483648
          %v1655 = vor.u32 1.1754944e-38, %v1654
          %v1656 = vsel %vm1653, %v1655, %v1651
          %v1657 = vmul.f32 %v1628, %v1656
          %vm1658 = vcmask 253952
          %1659 = vst.msk [vmem:[%s605] sm:$0x1] %vm1658, %v1657
        $region96: #{tpu_custom_call.1} parent=79 // pred_fallthru
          _
        %s1660 = sand.u32 %s390, 1
        %s1661 = scalar_lea.sflag [#allocation6], %s1660
        %s1662 = sand.u32 %s390, 1
        %s1663 = smul.addr %s1662, 16
        %s1664 = scalar_lea.vmem [#allocation9], %s1663
        %s1665 = sand.u32 %s416, 1
        %s1666 = scalar_lea.sflag [#allocation11], %s1665
        %s1667 = sand.u32 %s416, 1
        %s1668 = scalar_lea.vmem [#allocation10], %s1667
        // Predicated region
        $region97: #{tpu_custom_call.1} parent=79 // pred_check
          %p1669 = pneg %p400
        $region98: #{tpu_custom_call.1} parent=79 // pred_check_branch
          %1671 = sbr.rel (%p1669) target = $region100
        $region99: #{tpu_custom_call.1} parent=79 // pred_region
          %1673 = vsyncadd %s1661, 0
          %s1674 = smul.addr %s42, 4
          %s1675 = smul.addr %s43, 8
          %s1676 = sadd.s32 %s1674, %s1675
          %s1677 = smul.addr %s1676, 4
          %s1678 = scalar_lea.hbm %s15, %s1677
          %s1679 = sshll.u32 %s1664, 4
          %s1680 = int_to_ptr.vmem [resolvable:$true] %s1679
          %s1681 = sshll.u32 %s1678, 4
          %s1682 = int_to_ptr.hbm [resolvable:$true] %s1681
          %1687 = dma.vmem_to_hbm [thread:$0]  %s1680, 256, %s1682, %s1661, 64, 64, 4
        $region100: #{tpu_custom_call.1} parent=79 // pred_fallthru
          _
        // Predicated region
        $region101: #{tpu_custom_call.1} parent=79 // pred_check
          %p1688 = pneg %p426
        $region102: #{tpu_custom_call.1} parent=79 // pred_check_branch
          %1690 = sbr.rel (%p1688) target = $region104
        $region103: #{tpu_custom_call.1} parent=79 // pred_region
          %1692 = vsyncadd %s1666, 0
          %s1693 = scalar_lea.hbm %s16, %s42
          %s1695 = sshll.u32 %s1668, 4
          %s1696 = int_to_ptr.vmem [resolvable:$true] %s1695
          %s1697 = sshll.u32 %s1693, 4
          %s1698 = int_to_ptr.hbm [resolvable:$true] %s1697
          %1700 = dma.vmem_to_hbm [thread:$0]  %s1696, 16, %s1698, %s1666
        $region104: #{tpu_custom_call.1} parent=79 // pred_fallthru
          _
      $region80: #{tpu_custom_call.1} parent=5 // pred_fallthru
        _
      %p1701 = scmp.le.s32.totalorder 2, %s33
      // Predicated region
      $region105: #{tpu_custom_call.1} parent=5 // pred_check
        %p1702 = pneg %p1701
      $region106: #{tpu_custom_call.1} parent=5 // pred_check_branch
        %1704 = sbr.rel (%p1702) target = $region108
      $region107: #{tpu_custom_call.1} parent=5 // pred_region
        %s1705 = ssub.s32 %s33, 2
        // Predicated region
        $region109: #{tpu_custom_call.1} parent=107 // pred_check
          %p1706 = pneg %p406
        $region110: #{tpu_custom_call.1} parent=107 // pred_check_branch
          %1708 = sbr.rel (%p1706) target = $region112
        $region111: #{tpu_custom_call.1} parent=107 // pred_region
          %s1709 = sand.u32 %s391, 1
          %s1710 = scalar_lea.sflag [#allocation6], %s1709
          %s1711 = sand.u32 %s391, 1
          %s1712 = smul.addr %s1711, 16
          %s1713 = scalar_lea.vmem [#allocation9], %s1712
          %1715 = dma.done %s1710, 256
        $region112: #{tpu_custom_call.1} parent=107 // pred_fallthru
          _
        // Predicated region
        $region113: #{tpu_custom_call.1} parent=107 // pred_check
          %p1716 = pneg %p432
        $region114: #{tpu_custom_call.1} parent=107 // pred_check_branch
          %1718 = sbr.rel (%p1716) target = $region116
        $region115: #{tpu_custom_call.1} parent=107 // pred_region
          %s1719 = sand.u32 %s417, 1
          %s1720 = scalar_lea.sflag [#allocation11], %s1719
          %s1721 = sand.u32 %s417, 1
          %s1722 = scalar_lea.vmem [#allocation10], %s1721
          %1724 = dma.done %s1720, 16
        $region116: #{tpu_custom_call.1} parent=107 // pred_fallthru
          _
      $region108: #{tpu_custom_call.1} parent=5 // pred_fallthru
        _
    $region6: #{tpu_custom_call.1} parent=1 // loop_footer
      %s37 = sadd.s32 1, %s33
    $region7: #{tpu_custom_call.1} parent=1 // loop_footer_branch
      %32 = sbr.rel target = $region3
    $region8: #{tpu_custom_call.1} parent=1 // loop_exit
      _
    %1725 = vsyncpa [#allocation5], 1
    %s1726 = scalar_lea.sflag [#allocation5], 1
    %1727 = vsyncpa %s1726, 1
    %1728 = vsyncpa [#allocation8], 1
    %1729 = vsyncpa [#allocation6], 1
    %s1730 = scalar_lea.sflag [#allocation6], 1
    %1731 = vsyncpa %s1730, 1
    %1732 = vsyncpa [#allocation11], 1
    %s1733 = scalar_lea.sflag [#allocation11], 1
    %1734 = vsyncpa %s1733, 1

</llo_original>
